<compile_context>
chip_gen: v7x
topology: tpu7x:2x2x1
jax: 0.10.0
libtpu: 0.0.40
codegen_flags: <defaults>
</compile_context>

<pallas_src>
import functools

import numpy as np
import jax
import jax.numpy as jnp
from jax.experimental import pallas as pl
from jax.experimental.pallas import tpu as pltpu

# Keep f32 matmul/conv precision high so the Pallas kernel and the XLA reference
# agree tightly (both paths see the same precision setting).
jax.config.update("jax_default_matmul_precision", "highest")


# ---------------------------------------------------------------------------
# Kernels
# ---------------------------------------------------------------------------
def _apply_act(y, act_mode):
    if act_mode == "relu":
        return jnp.maximum(y, 0.0)
    if act_mode == "silu":
        return y * jax.nn.sigmoid(y)
    return y


def _conv_tap_kernel(x_ref, w_ref, b_ref, o_ref, acc_ref, *, act_mode):
    """Folded conv + bias + activation (no SE).  One (Cout, TR) output tile.

    x_ref: (1, 1, Cin, TR)    shifted input tap, NC(HW) layout (lanes = HW tile)
    w_ref: (kk, Cout, Cin)    all folded per-tap weights, resident in VMEM
    b_ref: (Cout, 1)          folded bias
    o_ref: (1, Cout, TR)      output tile (written once, at the last tap)
    acc_ref: (Cout, TR) f32   accumulator scratch
    """
    t = pl.program_id(2)

    @pl.when(t == 0)
    def _init():
        acc_ref[...] = jnp.zeros_like(acc_ref)

    x = x_ref[0, 0]                         # (Cin, TR)
    w = w_ref[t]                            # (Cout, Cin)
    acc_ref[...] += jnp.dot(w, x, preferred_element_type=jnp.float32)

    @pl.when(t == pl.num_programs(2) - 1)
    def _finalize():
        y = acc_ref[...] + b_ref[...]       # (Cout, TR) + (Cout, 1)
        o_ref[0] = _apply_act(y, act_mode).astype(o_ref.dtype)


def _conv_tap_pool_kernel(x_ref, w_ref, b_ref, o_ref, psum_ref, acc_ref):
    """Folded conv + bias, plus fused SE-squeeze partial sums (SE path).

    Same layout as `_conv_tap_kernel`, plus
    psum_ref: (1, Cout, 1) f32 — per-(batch, channel) sum over HW, accumulated
    across row tiles (output block revisited across grid axes 1 and 2).
    """
    ri = pl.program_id(1)
    t = pl.program_id(2)

    @pl.when(t == 0)
    def _init():
        acc_ref[...] = jnp.zeros_like(acc_ref)

    @pl.when(jnp.logical_and(ri == 0, t == 0))
    def _init_pool():
        psum_ref[...] = jnp.zeros_like(psum_ref)

    x = x_ref[0, 0]                         # (Cin, TR)
    w = w_ref[t]                            # (Cout, Cin)
    acc_ref[...] += jnp.dot(w, x, preferred_element_type=jnp.float32)

    @pl.when(t == pl.num_programs(2) - 1)
    def _finalize():
        y = acc_ref[...] + b_ref[...]       # f32 (Cout, TR); activation after SE
        o_ref[0] = y.astype(o_ref.dtype)
        psum_ref[0] += jnp.sum(y, axis=-1, keepdims=True)


def _se_mul_act_kernel(y_ref, a_ref, o_ref, *, act_mode):
    """out = activation(y * att), broadcast over the HW (lane) dim, native dtype.

    y_ref: (1, Cout, TR)   conv output tile
    a_ref: (1, Cout, 1)    per-(batch, channel) SE attention
    """
    y = y_ref[0]                            # (Cout, TR), native dtype
    a = a_ref[0].astype(y.dtype)            # (Cout, 1)
    o_ref[0] = _apply_act(y * a, act_mode).astype(o_ref.dtype)


# ---------------------------------------------------------------------------
# Branch folding (exact identity of MobileOneBlock._get_kernel_bias, eval BN)
# ---------------------------------------------------------------------------
def _fuse_conv_bn(w, bn_params):
    gamma, beta, mean, var, eps = bn_params
    std = jnp.sqrt(var + eps)
    scale = gamma / std
    return w * scale[:, None, None, None], beta - mean * scale


def _fold_branches(params, cfg):
    k = cfg["kernel_size"]
    cin, cout, groups = cfg["in_channels"], cfg["out_channels"], cfg["groups"]
    cin_g = cin // groups
    kernel = jnp.zeros((cout, cin_g, k, k), jnp.float32)
    bias = jnp.zeros((cout,), jnp.float32)

    for w, bnp in params["convs"]:                       # k x k conv-BN branches
        kw, kb = _fuse_conv_bn(w, bnp)
        kernel = kernel + kw
        bias = bias + kb

    if params["scale"] is not None:                      # 1x1 conv-BN branch
        w, bnp = params["scale"]
        kw, kb = _fuse_conv_bn(w, bnp)
        pad = k // 2
        kernel = kernel + jnp.pad(kw, ((0, 0), (0, 0), (pad, pad), (pad, pad)))
        bias = bias + kb

    if params["skip_bn"] is not None:                    # identity BN branch
        id_k = np.zeros((cin, cin_g, k, k), np.float32)
        for i in range(cin):
            id_k[i, i % cin_g, k // 2, k // 2] = 1.0
        kw, kb = _fuse_conv_bn(jnp.asarray(id_k), params["skip_bn"])
        kernel = kernel + kw
        bias = bias + kb

    if groups > 1:                                       # expand to dense block-diagonal
        og = cout // groups
        dense = jnp.zeros((cout, cin, k, k), kernel.dtype)
        for g in range(groups):
            dense = dense.at[g * og:(g + 1) * og,
                             g * cin_g:(g + 1) * cin_g].set(kernel[g * og:(g + 1) * og])
        kernel = dense
    return kernel, bias


def _extract_taps(x, k, stride, padding, ho, wo):
    """(k*k, B, Cin, Ho*Wo) shifted/strided views of the padded input."""
    b, cin, _, _ = x.shape
    xp = jnp.pad(x, ((0, 0), (0, 0), (padding, padding), (padding, padding)))
    taps = []
    for i in range(k):
        for j in range(k):
            v = xp[:, :, i:i + (ho - 1) * stride + 1:stride,
                         j:j + (wo - 1) * stride + 1:stride]
            taps.append(v.reshape(b, cin, ho * wo))
    return jnp.stack(taps, axis=0)


def _se_attention(pooled, se_params):
    """Squeeze-Excite FCs + sigmoid on (B, Cout) pooled features (plain XLA)."""
    wr, br, we, be = se_params
    crd, cout = wr.shape[0], wr.shape[1]
    h = jax.nn.relu(pooled @ wr.reshape(crd, cout).T + br)
    return jax.nn.sigmoid(h @ we.reshape(cout, crd).T + be)


def _round_up(x, m):
    return (x + m - 1) // m * m


def _pick_row_tile(r):
    # Lane (HW) tile: multiple of 128, sized so blocks stay far below the
    # smallest scoped-VMEM default (16 MiB on v5e) even at C=512 f32.
    if r <= 128:
        return 128
    if r >= 2048:
        return 512
    if r >= 512:
        return 256
    return 128


# ---------------------------------------------------------------------------
# Forward wrapper
# ---------------------------------------------------------------------------
def mobileone_block_forward(x, params, cfg):
    b, _, h, w = x.shape
    cin, cout = cfg["in_channels"], cfg["out_channels"]
    k, stride, padding = cfg["kernel_size"], cfg["stride"], cfg["padding"]
    if params["scale"] is not None or params["skip_bn"] is not None:
        assert padding == k // 2, "branch shapes only match when padding == kernel_size // 2"

    ho = (h + 2 * padding - k) // stride + 1
    wo = (w + 2 * padding - k) // stride + 1
    r = ho * wo
    kk = k * k

    kernel, bias = _fold_branches(params, cfg)                 # (Cout,Cin,k,k), (Cout,)
    w_taps = jnp.transpose(kernel, (2, 3, 0, 1)).reshape(kk, cout, cin)
    bias2d = bias.reshape(cout, 1).astype(jnp.float32)

    x_taps = _extract_taps(x, k, stride, padding, ho, wo)      # (kk, B, Cin, R)
    tr = _pick_row_tile(r)
    r_pad = _round_up(r, tr)
    if r_pad != r:
        x_taps = jnp.pad(x_taps, ((0, 0), (0, 0), (0, 0), (0, r_pad - r)))
    n_row_tiles = r_pad // tr

    use_se = params["se"] is not None
    act_mode = "relu" if cfg["act"] else "silu"
    itemsize = x.dtype.itemsize

    conv_in_specs = [
        pl.BlockSpec((1, 1, cin, tr), lambda bi, ri, ti: (ti, bi, 0, ri)),
        pl.BlockSpec((kk, cout, cin), lambda bi, ri, ti: (0, 0, 0)),    # resident weights
        pl.BlockSpec((cout, 1), lambda bi, ri, ti: (0, 0)),
    ]
    conv_out_spec = pl.BlockSpec((1, cout, tr), lambda bi, ri, ti: (bi, 0, ri))
    conv_cost = pl.CostEstimate(
        flops=2 * b * kk * cin * cout * r_pad,
        transcendentals=0 if (use_se or cfg["act"]) else b * cout * r_pad,
        bytes_accessed=(x_taps.size + w_taps.size + b * cout * r_pad) * itemsize,
    )

    if not use_se:
        # ----- Single pass: conv GEMM + bias + activation -----
        y_pad = pl.pallas_call(
            functools.partial(_conv_tap_kernel, act_mode=act_mode),
            out_shape=jax.ShapeDtypeStruct((b, cout, r_pad), x.dtype),
            grid_spec=pltpu.PrefetchScalarGridSpec(
                num_scalar_prefetch=0,
                grid=(b, n_row_tiles, kk),
                in_specs=conv_in_specs,
                out_specs=conv_out_spec,
                scratch_shapes=[pltpu.VMEM((cout, tr), jnp.float32)],
            ),
            compiler_params=pltpu.CompilerParams(
                dimension_semantics=("parallel", "parallel", "arbitrary")),
            cost_estimate=conv_cost,
        )(x_taps, w_taps, bias2d)
        return y_pad[:, :, :r].reshape(b, cout, ho, wo)

    # ----- Pass 1: conv GEMM + bias, with fused SE-squeeze partial sums -----
    y_pad, psum = pl.pallas_call(
        _conv_tap_pool_kernel,
        out_shape=(jax.ShapeDtypeStruct((b, cout, r_pad), x.dtype),
                   jax.ShapeDtypeStruct((b, cout, 1), jnp.float32)),
        grid_spec=pltpu.PrefetchScalarGridSpec(
            num_scalar_prefetch=0,
            grid=(b, n_row_tiles, kk),
            in_specs=conv_in_specs,
            out_specs=[conv_out_spec,
                       pl.BlockSpec((1, cout, 1), lambda bi, ri, ti: (bi, 0, 0))],
            scratch_shapes=[pltpu.VMEM((cout, tr), jnp.float32)],
        ),
        compiler_params=pltpu.CompilerParams(
            # psum block is revisited across row tiles -> axis 1 must be arbitrary.
            dimension_semantics=("parallel", "arbitrary", "arbitrary")),
        cost_estimate=conv_cost,
    )(x_taps, w_taps, bias2d)

    # ----- SE FCs + sigmoid (tiny (B, C) work -> plain XLA) -----
    # Padded HW columns contribute exactly `bias` each (x taps are zero there);
    # subtract that analytically instead of masking inside the kernel.
    pooled = (psum[:, :, 0] - (r_pad - r) * bias[None, :]) / r          # (B, Cout) f32
    att = _se_attention(pooled, params["se"]).astype(x.dtype)
    att3 = att.reshape(b, cout, 1)

    # ----- Pass 2: lane-dense broadcast multiply + activation -----
    mul_cost = pl.CostEstimate(
        flops=2 * b * cout * r_pad,
        transcendentals=0 if cfg["act"] else b * cout * r_pad,
        bytes_accessed=2 * b * cout * r_pad * itemsize,
    )
    out_pad = pl.pallas_call(
        functools.partial(_se_mul_act_kernel, act_mode=act_mode),
        out_shape=jax.ShapeDtypeStruct((b, cout, r_pad), x.dtype),
        grid_spec=pltpu.PrefetchScalarGridSpec(
            num_scalar_prefetch=0,
            grid=(b, n_row_tiles),
            in_specs=[
                pl.BlockSpec((1, cout, tr), lambda bi, ri: (bi, 0, ri)),
                pl.BlockSpec((1, cout, 1), lambda bi, ri: (bi, 0, 0)),
            ],
            out_specs=pl.BlockSpec((1, cout, tr), lambda bi, ri: (bi, 0, ri)),
        ),
        compiler_params=pltpu.CompilerParams(
            dimension_semantics=("parallel", "parallel")),
        cost_estimate=mul_cost,
    )(y_pad, att3)

    return out_pad[:, :, :r].reshape(b, cout, ho, wo)


# ---------------------------------------------------------------------------
# Pure-JAX reference: literal multi-branch eval forward (conv + BN per branch)
# ---------------------------------------------------------------------------
def _reference_forward(x, params, cfg):
    stride, padding, groups = cfg["stride"], cfg["padding"], cfg["groups"]

    def conv2d(inp, w, pad):
        return jax.lax.conv_general_dilated(
            inp, w, window_strides=(stride, stride),
            padding=((pad, pad), (pad, pad)),
            dimension_numbers=("NCHW", "OIHW", "NCHW"),
            feature_group_count=groups)

    def bn(inp, bnp):
        gamma, beta, mean, var, eps = bnp
        scale = gamma / jnp.sqrt(var + eps)
        shift = beta - mean * scale
        return inp * scale[None, :, None, None] + shift[None, :, None, None]

    out = 0.0
    if params["skip_bn"] is not None:
        out = out + bn(x, params["skip_bn"])
    if params["scale"] is not None:
        w, bnp = params["scale"]
        out = out + bn(conv2d(x, w, 0), bnp)
    for w, bnp in params["convs"]:
        out = out + bn(conv2d(x, w, padding), bnp)

    if params["se"] is not None:
        pooled = jnp.mean(out, axis=(2, 3))
        att = _se_attention(pooled, params["se"])
        out = out * att[:, :, None, None]

    return jax.nn.relu(out) if cfg["act"] else jax.nn.silu(out)


# ---------------------------------------------------------------------------
if __name__ == "__main__":
    key = jax.random.PRNGKey(0)
    ks = list(jax.random.split(key, 16))

    B, C, H, W = 2, 16, 16, 16
    cfg = dict(in_channels=C, out_channels=C, kernel_size=3, stride=1,
               padding=1, groups=1, act=True, use_se=True, num_conv_branches=2)
    k = cfg["kernel_size"]
    cin_g = C // cfg["groups"]
    rd = int(C * 0.0625)                       # SEBlock reduction channels

    def uni(kref, shape, bound):
        return jax.random.uniform(kref, shape, jnp.float32, -bound, bound)

    def make_bn(kref, c):
        k1, k2, k3, k4 = jax.random.split(kref, 4)
        return (jax.random.uniform(k1, (c,), jnp.float32, 0.5, 1.5),   # gamma
                uni(k2, (c,), 0.5),                                    # beta
                uni(k3, (c,), 0.5),                                    # running_mean
                jax.random.uniform(k4, (c,), jnp.float32, 0.5, 1.5),   # running_var
                1e-5)

    x = jax.random.normal(ks[0], (B, C, H, W), dtype=jnp.float32)

    bound_k = 1.0 / (cin_g * k * k) ** 0.5
    bound_1 = 1.0 / cin_g ** 0.5
    convs = []
    for i in range(cfg["num_conv_branches"]):
        convs.append((uni(ks[1 + 2 * i], (C, cin_g, k, k), bound_k),
                      make_bn(ks[2 + 2 * i], C)))
    params = {
        "convs": convs,
        "scale": ((uni(ks[6], (C, cin_g, 1, 1), bound_1), make_bn(ks[7], C))
                  if k > 1 else None),
        "skip_bn": (make_bn(ks[8], C)
                    if (cfg["out_channels"] == cfg["in_channels"] and cfg["stride"] == 1)
                    else None),
        "se": ((uni(ks[9], (rd, C, 1, 1), 1.0 / C ** 0.5),
                uni(ks[10], (rd,), 1.0 / C ** 0.5),
                uni(ks[11], (C, rd, 1, 1), 1.0 / rd ** 0.5),
                uni(ks[12], (C,), 1.0 / rd ** 0.5))
               if cfg["use_se"] else None),
    }

    # --- Config 1: SE + ReLU (two-pass path with fused squeeze) ---
    fwd = jax.jit(functools.partial(mobileone_block_forward, cfg=cfg))
    out = jax.block_until_ready(fwd(x, params))
    ref = jax.block_until_ready(_reference_forward(x, params, cfg))
    assert out.shape == ref.shape == (B, C, H, W)
    err1 = float(jnp.max(jnp.abs(out - ref)))
    assert jnp.allclose(out, ref, atol=1e-3, rtol=1e-3), f"SE path mismatch: {err1}"

    # --- Config 2: no SE + SiLU (single fused-activation pass) ---
    cfg2 = dict(cfg, act=False, use_se=False)
    params2 = dict(params, se=None)
    fwd2 = jax.jit(functools.partial(mobileone_block_forward, cfg=cfg2))
    out2 = jax.block_until_ready(fwd2(x, params2))
    ref2 = jax.block_until_ready(_reference_forward(x, params2, cfg2))
    assert out2.shape == ref2.shape == (B, C, H, W)
    err2 = float(jnp.max(jnp.abs(out2 - ref2)))
    assert jnp.allclose(out2, ref2, atol=1e-3, rtol=1e-3), f"no-SE path mismatch: {err2}"

    print("KERNEL_OK")
</pallas_src>

<mosaic_0001>
module attributes {stable_mosaic.version = 11 : i64} {
  func.func @_conv_tap_pool_kernel(%arg0: i32, %arg1: i32, %arg2: i32, %arg3: memref<1x1x16x128xf32, #tpu.memory_space<vmem>>, %arg4: memref<9x16x16xf32, #tpu.memory_space<vmem>>, %arg5: memref<16x1xf32, #tpu.memory_space<vmem>>, %arg6: memref<1x16x128xf32, #tpu.memory_space<vmem>>, %arg7: memref<1x16x1xf32, #tpu.memory_space<vmem>>, %arg8: memref<16x128xf32, #tpu.memory_space<vmem>>) attributes {dimension_semantics = [#tpu.dimension_semantics<parallel>, #tpu.dimension_semantics<arbitrary>, #tpu.dimension_semantics<arbitrary>], iteration_bounds = array<i64: 2, 2, 9>, scalar_prefetch = 0 : i64, scratch_operands = 1 : i64, tpu.core_type = #tpu.core_type<tc>, window_params = [{transform_indices = @transform_0, window_bounds = array<i64: 1, 1, 16, 128>}, {pipeline_mode = #tpu.pipeline_mode<synchronous>, transform_indices = @transform_1, window_bounds = array<i64: 9, 16, 16>}, {pipeline_mode = #tpu.pipeline_mode<synchronous>, transform_indices = @transform_2, window_bounds = array<i64: 16, 1>}, {transform_indices = @transform_3, window_bounds = array<i64: 1, 16, 128>}, {transform_indices = @transform_4, window_bounds = array<i64: 1, 16, 1>}]} {
    %c0_i32 = arith.constant 0 : i32
    %0 = arith.cmpi eq, %arg2, %c0_i32 : i32
    %1 = arith.extui %0 : i1 to i32
    %c0_i32_0 = arith.constant 0 : i32
    %2 = arith.cmpi ne, %1, %c0_i32_0 : i32
    scf.if %2 {
      %cst_14 = arith.constant 0.000000e+00 : f32
      %20 = vector.broadcast %cst_14 : f32 to vector<16x128xf32>
      %c0_15 = arith.constant 0 : index
      %c0_16 = arith.constant 0 : index
      %21 = vector.load %arg8[%c0_15, %c0_16] : memref<16x128xf32, #tpu.memory_space<vmem>>, vector<16x128xf32>
      tpu.vector_store %arg8[%c0_15, %c0_16], %20 {strides = array<i32>} : memref<16x128xf32, #tpu.memory_space<vmem>>, vector<16x128xf32>,
    } else {
    }
    %c0_i32_1 = arith.constant 0 : i32
    %3 = arith.cmpi eq, %arg1, %c0_i32_1 : i32
    %c0_i32_2 = arith.constant 0 : i32
    %4 = arith.cmpi eq, %arg2, %c0_i32_2 : i32
    %5 = arith.andi %3, %4 : i1
    %6 = arith.extui %5 : i1 to i32
    %c0_i32_3 = arith.constant 0 : i32
    %7 = arith.cmpi ne, %6, %c0_i32_3 : i32
    scf.if %7 {
      %cst_14 = arith.constant 0.000000e+00 : f32
      %20 = vector.broadcast %cst_14 : f32 to vector<1x16x1xf32>
      %c0_15 = arith.constant 0 : index
      %c0_16 = arith.constant 0 : index
      %c0_17 = arith.constant 0 : index
      %21 = vector.load %arg7[%c0_15, %c0_16, %c0_17] : memref<1x16x1xf32, #tpu.memory_space<vmem>>, vector<1x16x1xf32>
      tpu.vector_store %arg7[%c0_15, %c0_16, %c0_17], %20 {strides = array<i32>} : memref<1x16x1xf32, #tpu.memory_space<vmem>>, vector<1x16x1xf32>,
    } else {
    }
    %c0 = arith.constant 0 : index
    %c0_4 = arith.constant 0 : index
    %c0_5 = arith.constant 0 : index
    %c0_6 = arith.constant 0 : index
    %8 = vector.load %arg3[%c0, %c0_4, %c0_5, %c0_6] : memref<1x1x16x128xf32, #tpu.memory_space<vmem>>, vector<1x1x16x128xf32>
    %9 = vector.shape_cast %8 : vector<1x1x16x128xf32> to vector<16x128xf32>
    %10 = arith.index_cast %arg2 : i32 to index
    %c0_7 = arith.constant 0 : index
    %c0_8 = arith.constant 0 : index
    %11 = vector.load %arg4[%10, %c0_7, %c0_8] : memref<9x16x16xf32, #tpu.memory_space<vmem>>, vector<1x16x16xf32>
    %12 = vector.shape_cast %11 : vector<1x16x16xf32> to vector<16x16xf32>
    %c0_9 = arith.constant 0 : index
    %c0_10 = arith.constant 0 : index
    %13 = vector.load %arg8[%c0_9, %c0_10] : memref<16x128xf32, #tpu.memory_space<vmem>>, vector<16x128xf32>
    %cst = arith.constant dense<0.000000e+00> : vector<16x128xf32>
    %14 = tpu.matmul %12, %9, %cst {dimension_numbers = #tpu.dot_dimension_numbers<[1], [0], [0], [1], [0, 0, 1, 1], [], []>, precision = #tpu.contract_precision<fp32>} : vector<16x16xf32>, vector<16x128xf32>, vector<16x128xf32> -> vector<16x128xf32>
    %15 = arith.addf %13, %14 : vector<16x128xf32>
    %c0_11 = arith.constant 0 : index
    %c0_12 = arith.constant 0 : index
    %16 = vector.load %arg8[%c0_11, %c0_12] : memref<16x128xf32, #tpu.memory_space<vmem>>, vector<16x128xf32>
    tpu.vector_store %arg8[%c0_11, %c0_12], %15 {strides = array<i32>} : memref<16x128xf32, #tpu.memory_space<vmem>>, vector<16x128xf32>,
    %c8_i32 = arith.constant 8 : i32
    %17 = arith.cmpi eq, %arg2, %c8_i32 : i32
    %18 = arith.extui %17 : i1 to i32
    %c0_i32_13 = arith.constant 0 : i32
    %19 = arith.cmpi ne, %18, %c0_i32_13 : i32
    scf.if %19 {
      %c0_14 = arith.constant 0 : index
      %c0_15 = arith.constant 0 : index
      %20 = vector.load %arg8[%c0_14, %c0_15] : memref<16x128xf32, #tpu.memory_space<vmem>>, vector<16x128xf32>
      %c0_16 = arith.constant 0 : index
      %c0_17 = arith.constant 0 : index
      %21 = vector.load %arg5[%c0_16, %c0_17] : memref<16x1xf32, #tpu.memory_space<vmem>>, vector<16x1xf32>
      %22 = vector.broadcast %21 : vector<16x1xf32> to vector<16x128xf32>
      %23 = arith.addf %20, %22 : vector<16x128xf32>
      %c0_18 = arith.constant 0 : index
      %c0_19 = arith.constant 0 : index
      %c0_20 = arith.constant 0 : index
      %24 = vector.load %arg6[%c0_18, %c0_19, %c0_20] : memref<1x16x128xf32, #tpu.memory_space<vmem>>, vector<1x16x128xf32>
      %25 = vector.shape_cast %24 : vector<1x16x128xf32> to vector<16x128xf32>
      %26 = vector.shape_cast %23 : vector<16x128xf32> to vector<1x16x128xf32>
      tpu.vector_store %arg6[%c0_18, %c0_19, %c0_20], %26 {strides = array<i32>} : memref<1x16x128xf32, #tpu.memory_space<vmem>>, vector<1x16x128xf32>,
      %c0_21 = arith.constant 0 : index
      %c0_22 = arith.constant 0 : index
      %c0_23 = arith.constant 0 : index
      %27 = vector.load %arg7[%c0_21, %c0_22, %c0_23] : memref<1x16x1xf32, #tpu.memory_space<vmem>>, vector<1x16x1xf32>
      %28 = vector.shape_cast %27 : vector<1x16x1xf32> to vector<16x1xf32>
      %cst_24 = arith.constant dense<0.000000e+00> : vector<16xf32>
      %29 = vector.multi_reduction <add>, %23, %cst_24 [1] : vector<16x128xf32> to vector<16xf32>
      %30 = vector.shape_cast %29 : vector<16xf32> to vector<16x1xf32>
      %31 = arith.addf %28, %30 : vector<16x1xf32>
      %c0_25 = arith.constant 0 : index
      %c0_26 = arith.constant 0 : index
      %c0_27 = arith.constant 0 : index
      %32 = vector.load %arg7[%c0_25, %c0_26, %c0_27] : memref<1x16x1xf32, #tpu.memory_space<vmem>>, vector<1x16x1xf32>
      %33 = vector.shape_cast %32 : vector<1x16x1xf32> to vector<16x1xf32>
      %34 = vector.shape_cast %31 : vector<16x1xf32> to vector<1x16x1xf32>
      tpu.vector_store %arg7[%c0_25, %c0_26, %c0_27], %34 {strides = array<i32>} : memref<1x16x1xf32, #tpu.memory_space<vmem>>, vector<1x16x1xf32>,
    } else {
    }
    return
  }
  func.func @transform_0(%arg0: i32, %arg1: i32, %arg2: i32) -> (i32, i32, i32, i32) {
    %c0_i32 = arith.constant 0 : i32
    %c0_i32_0 = arith.constant 0 : i32
    return %arg2, %arg0, %c0_i32, %arg1 : i32, i32, i32, i32
  }
  func.func @transform_1(%arg0: i32, %arg1: i32, %arg2: i32) -> (i32, i32, i32) {
    %c0_i32 = arith.constant 0 : i32
    %c0_i32_0 = arith.constant 0 : i32
    %c0_i32_1 = arith.constant 0 : i32
    %c0_i32_2 = arith.constant 0 : i32
    return %c0_i32, %c0_i32_0, %c0_i32_1 : i32, i32, i32
  }
  func.func @transform_2(%arg0: i32, %arg1: i32, %arg2: i32) -> (i32, i32) {
    %c0_i32 = arith.constant 0 : i32
    %c0_i32_0 = arith.constant 0 : i32
    %c0_i32_1 = arith.constant 0 : i32
    return %c0_i32, %c0_i32_0 : i32, i32
  }
  func.func @transform_3(%arg0: i32, %arg1: i32, %arg2: i32) -> (i32, i32, i32) {
    %c0_i32 = arith.constant 0 : i32
    %c0_i32_0 = arith.constant 0 : i32
    return %arg0, %c0_i32, %arg1 : i32, i32, i32
  }
  func.func @transform_4(%arg0: i32, %arg1: i32, %arg2: i32) -> (i32, i32, i32) {
    %c0_i32 = arith.constant 0 : i32
    %c0_i32_0 = arith.constant 0 : i32
    %c0_i32_1 = arith.constant 0 : i32
    return %arg0, %c0_i32, %c0_i32_0 : i32, i32, i32
  }
}

module attributes {stable_mosaic.version = 11 : i64} {
  func.func @_se_mul_act_kernel(%arg0: i32, %arg1: i32, %arg2: memref<1x16x128xf32, #tpu.memory_space<vmem>>, %arg3: memref<1x16x1xf32, #tpu.memory_space<vmem>>, %arg4: memref<1x16x128xf32, #tpu.memory_space<vmem>>) attributes {dimension_semantics = [#tpu.dimension_semantics<parallel>, #tpu.dimension_semantics<parallel>], iteration_bounds = array<i64: 2, 2>, scalar_prefetch = 0 : i64, scratch_operands = 0 : i64, tpu.core_type = #tpu.core_type<tc>, window_params = [{transform_indices = @transform_0, window_bounds = array<i64: 1, 16, 128>}, {transform_indices = @transform_1, window_bounds = array<i64: 1, 16, 1>}, {transform_indices = @transform_2, window_bounds = array<i64: 1, 16, 128>}]} {
    %c0 = arith.constant 0 : index
    %c0_0 = arith.constant 0 : index
    %c0_1 = arith.constant 0 : index
    %0 = vector.load %arg2[%c0, %c0_0, %c0_1] : memref<1x16x128xf32, #tpu.memory_space<vmem>>, vector<1x16x128xf32>
    %1 = vector.shape_cast %0 : vector<1x16x128xf32> to vector<16x128xf32>
    %c0_2 = arith.constant 0 : index
    %c0_3 = arith.constant 0 : index
    %c0_4 = arith.constant 0 : index
    %2 = vector.load %arg3[%c0_2, %c0_3, %c0_4] : memref<1x16x1xf32, #tpu.memory_space<vmem>>, vector<1x16x1xf32>
    %3 = vector.shape_cast %2 : vector<1x16x1xf32> to vector<16x1xf32>
    %4 = vector.broadcast %3 : vector<16x1xf32> to vector<16x128xf32>
    %5 = arith.mulf %1, %4 : vector<16x128xf32>
    %cst = arith.constant 0.000000e+00 : f32
    %6 = vector.broadcast %cst : f32 to vector<16x128xf32>
    %7 = arith.maximumf %5, %6 : vector<16x128xf32>
    %c0_5 = arith.constant 0 : index
    %c0_6 = arith.constant 0 : index
    %c0_7 = arith.constant 0 : index
    %8 = vector.load %arg4[%c0_5, %c0_6, %c0_7] : memref<1x16x128xf32, #tpu.memory_space<vmem>>, vector<1x16x128xf32>
    %9 = vector.shape_cast %8 : vector<1x16x128xf32> to vector<16x128xf32>
    %10 = vector.shape_cast %7 : vector<16x128xf32> to vector<1x16x128xf32>
    tpu.vector_store %arg4[%c0_5, %c0_6, %c0_7], %10 {strides = array<i32>} : memref<1x16x128xf32, #tpu.memory_space<vmem>>, vector<1x16x128xf32>,
    return
  }
  func.func @transform_0(%arg0: i32, %arg1: i32) -> (i32, i32, i32) {
    %c0_i32 = arith.constant 0 : i32
    %c0_i32_0 = arith.constant 0 : i32
    return %arg0, %c0_i32, %arg1 : i32, i32, i32
  }
  func.func @transform_1(%arg0: i32, %arg1: i32) -> (i32, i32, i32) {
    %c0_i32 = arith.constant 0 : i32
    %c0_i32_0 = arith.constant 0 : i32
    %c0_i32_1 = arith.constant 0 : i32
    return %arg0, %c0_i32, %c0_i32_0 : i32, i32, i32
  }
  func.func @transform_2(%arg0: i32, %arg1: i32) -> (i32, i32, i32) {
    %c0_i32 = arith.constant 0 : i32
    %c0_i32_0 = arith.constant 0 : i32
    return %arg0, %c0_i32, %arg1 : i32, i32, i32
  }
}

</mosaic_0001>

<llo_original>
// kernel: mobileone_block_forward.3
$region0: #{mobileone_block_forward.3}
  #allocation0 [shape = 'u32[]', space=smem, size = 0x4, offset = 0x4, fixed_abs, tag = 'smem constant byte address 0x4 - core index']
  #allocation1 [shape = 'u32[144,128]{1,0:T(1,128)}', space=vmem, size = 0x12000, scoped, tag = 'internal scratch']
  %s0 = inlined_call_operand.vmem [shape: f32[2,16,256], index: 0, kind: input, shape index: {}]
  %s1 = inlined_call_operand.vmem [shape: f32[2,16,1], index: 1, kind: input, shape index: {}]
  %s2 = inlined_call_operand.vmem [shape: f32[2,16,256], index: 2, kind: output, shape index: {}]
  %s3 = sld [smem:[#allocation0]]
  $region113: #{mobileone_block_forward.3} parent=0
    _
  %s5 = ssub.s32 1, %s3
  %s6 = scalar_select 0, %s5, %s3
  $region1: #{mobileone_block_forward.3} parent=0
    #allocation2 [shape = 'u8[16384]{0}', space=vmem, size = 0x4000, scoped, tag = 'input window, operand 0']
    #allocation3 [shape = 'u8[16384]{0}', space=vmem, size = 0x4000, scoped, tag = 'output window, operand 0']
    loop: start=0, step=1, limit=6
    $region2: #{mobileone_block_forward.3} parent=1 // loop_pre_header
      _
    $region3: #{mobileone_block_forward.3} parent=1 // loop_header
      %s8 = sphi 0, %s12
      %p9 = scmp.ge.s32.totalorder %s8, 6
      %s15 = sphi 0, %s27
      %s16 = sphi 0, %s23
      %s17 = sphi 0, %s15
      %s18 = sphi 0, %s16
      %s19 = sphi 0, %s17
      %s20 = sphi 0, %s18
      %s32 = sphi 0, %s34
      %s35 = sphi 0, %s32
      %s36 = sphi 0, %s35
      %s52 = sphi 0, %s36
      %s58 = sphi 0, %s60
      %s61 = sphi 0, %s58
      %s62 = sphi 0, %s61
      %s78 = sphi 0, %s62
      %s86 = sphi 0, %s88
      %s89 = sphi 0, %s86
      %s90 = sphi 0, %s89
      %s106 = sphi 0, %s90
    $region4: #{mobileone_block_forward.3} parent=1 // loop_header_branch
      %11 = sbr.rel (%p9) target = $region8
    $region5: #{mobileone_block_forward.3} parent=1 // loop_body
      %s13 = ssub.s32 %s8, 1
      %s14 = ssub.s32 %s8, 2
      %s21 = sadd.s32 1, %s16
      %p22 = scmp.ge.s32.totalorder %s21, 2
      %s23 = scalar_select %p22, 0, %s21
      %s24 = sadd.s32 1, %s15
      %s25 = scalar_select %p22, %s24, %s15
      %p26 = scmp.ge.s32.totalorder %s25, 2
      %s27 = scalar_select %p26, 0, %s25
      %s28 = ssub.s32 %s15, %s27
      %s29 = ssub.s32 %s16, %s23
      %s30 = sor.u32 %s28, %s29
      %p31 = scmp.eq.s32.totalorder %s30, 0
      %s33 = sadd.s32 %s32, 1
      %s34 = scalar_select %p31, %s32, %s33
      %p37 = pneg %p31
      %p38 = scmp.eq.s32.totalorder %s8, 3
      %p39 = por %p37, %p38
      %p40 = scmp.ne.s32.totalorder %s32, %s35
      %p41 = scmp.eq.s32.totalorder %s8, 0
      %p42 = por %p40, %p41
      %p43 = scmp.ne.s32.totalorder %s32, %s35
      %p44 = scmp.eq.s32.totalorder %s13, 3
      %p45 = por %p43, %p44
      %p46 = scmp.ne.s32.totalorder %s35, %s36
      %p47 = scmp.eq.s32.totalorder %s13, 0
      %p48 = por %p46, %p47
      %p49 = scmp.ne.s32.totalorder %s35, %s36
      %p50 = scmp.eq.s32.totalorder %s14, 3
      %p51 = por %p49, %p50
      %p53 = scmp.ne.s32.totalorder %s36, %s52
      %p54 = scmp.eq.s32.totalorder %s14, 0
      %p55 = por %p53, %p54
      %s56 = ssub.s32 %s15, %s27
      %p57 = scmp.eq.s32.totalorder %s56, 0
      %s59 = sadd.s32 %s58, 1
      %s60 = scalar_select %p57, %s58, %s59
      %p63 = pneg %p57
      %p64 = scmp.eq.s32.totalorder %s8, 3
      %p65 = por %p63, %p64
      %p66 = scmp.ne.s32.totalorder %s58, %s61
      %p67 = scmp.eq.s32.totalorder %s8, 0
      %p68 = por %p66, %p67
      %p69 = scmp.ne.s32.totalorder %s58, %s61
      %p70 = scmp.eq.s32.totalorder %s13, 3
      %p71 = por %p69, %p70
      %p72 = scmp.ne.s32.totalorder %s61, %s62
      %p73 = scmp.eq.s32.totalorder %s13, 0
      %p74 = por %p72, %p73
      %p75 = scmp.ne.s32.totalorder %s61, %s62
      %p76 = scmp.eq.s32.totalorder %s14, 3
      %p77 = por %p75, %p76
      %p79 = scmp.ne.s32.totalorder %s62, %s78
      %p80 = scmp.eq.s32.totalorder %s14, 0
      %p81 = por %p79, %p80
      %s82 = ssub.s32 %s15, %s27
      %s83 = ssub.s32 %s16, %s23
      %s84 = sor.u32 %s82, %s83
      %p85 = scmp.eq.s32.totalorder %s84, 0
      %s87 = sadd.s32 %s86, 1
      %s88 = scalar_select %p85, %s86, %s87
      %p91 = pneg %p85
      %p92 = scmp.eq.s32.totalorder %s8, 3
      %p93 = por %p91, %p92
      %p94 = scmp.ne.s32.totalorder %s86, %s89
      %p95 = scmp.eq.s32.totalorder %s8, 0
      %p96 = por %p94, %p95
      %p97 = scmp.ne.s32.totalorder %s86, %s89
      %p98 = scmp.eq.s32.totalorder %s13, 3
      %p99 = por %p97, %p98
      %p100 = scmp.ne.s32.totalorder %s89, %s90
      %p101 = scmp.eq.s32.totalorder %s13, 0
      %p102 = por %p100, %p101
      %p103 = scmp.ne.s32.totalorder %s89, %s90
      %p104 = scmp.eq.s32.totalorder %s14, 3
      %p105 = por %p103, %p104
      %p107 = scmp.ne.s32.totalorder %s90, %s106
      %p108 = scmp.eq.s32.totalorder %s14, 0
      %p109 = por %p107, %p108
      %p110 = scmp.le.s32.totalorder 1, %s8
      %p111 = scmp.lt.s32.totalorder %s8, 5
      %p112 = pnand %p110, %p111
      %p113 = pneg %p112
      // Predicated region
      $region9: #{mobileone_block_forward.3} parent=5 // pred_check
        _
      $region10: #{mobileone_block_forward.3} parent=5 // pred_check_branch
        %115 = sbr.rel (%p112) target = $region12
      $region11: #{mobileone_block_forward.3} parent=5 // pred_region
        %s116 = ssub.s32 %s8, 1
      $region12: #{mobileone_block_forward.3} parent=5 // pred_fallthru
        _
      %p117 = scmp.lt.s32.totalorder %s8, 4
      // Predicated region
      $region13: #{mobileone_block_forward.3} parent=5 // pred_check
        %p118 = pneg %p117
      $region14: #{mobileone_block_forward.3} parent=5 // pred_check_branch
        %120 = sbr.rel (%p118) target = $region16
      $region15: #{mobileone_block_forward.3} parent=5 // pred_region
        // Predicated region
        $region17: #{mobileone_block_forward.3} parent=15 // pred_check
          %p121 = pneg %p42
        $region18: #{mobileone_block_forward.3} parent=15 // pred_check_branch
          %123 = sbr.rel (%p121) target = $region20
        $region19: #{mobileone_block_forward.3} parent=15 // pred_region
          %s124 = sand.u32 %s32, 1
          %s125 = sand.u32 %s32, 1
          %s126 = smul.addr %s125, 16
          %s127 = scalar_lea.vmem [#allocation2], %s126
          %s128 = smul.addr %s15, 4
          %s129 = sadd.s32 %s16, %s128
          %s130 = smul.addr %s129, 8
          %s131 = scalar_lea.vmem %s0, %s130
          // Predicated region
          $region21: #{mobileone_block_forward.3} parent=19 // pred_check
            _
          $region22: #{mobileone_block_forward.3} parent=19 // pred_check_branch
            %133 = sbr.rel (0) target = $region24
          $region23: #{mobileone_block_forward.3} parent=19 // pred_region
            // Predicated region
            $region25: #{mobileone_block_forward.3} parent=23 // pred_check
              _
            $region26: #{mobileone_block_forward.3} parent=23 // pred_check_branch
              %135 = sbr.rel (0) target = $region28
            $region27: #{mobileone_block_forward.3} parent=23 // pred_region
              // Predicated region
              $region40: #{mobileone_block_forward.3} parent=27 // pred_check
                _
              $region41: #{mobileone_block_forward.3} parent=27 // pred_check_branch
                %152 = sbr.rel (0) target = $region43
              $region42: #{mobileone_block_forward.3} parent=27 // pred_region
                loop: start=0, step=1, limit=1
                $region44: #{mobileone_block_forward.3} parent=42 // loop_pre_header
                  _
                $region45: #{mobileone_block_forward.3} parent=42 // loop_header
                  %s154 = sphi 0, %s158
                  %p155 = scmp.ge.s32.totalorder %s154, 1
                  %s159 = sphi %s131, %s131
                  %s160 = sphi %s127, %s127
                $region46: #{mobileone_block_forward.3} parent=42 // loop_header_branch
                  %157 = sbr.rel (%p155) target = $region50
                $region47: #{mobileone_block_forward.3} parent=42 // loop_body
                  %v161 = vld [vmem:[%s159] sm:$0xff]
                  %162 = vst [vmem:[%s160] sm:$0xff] %v161
                  %v163 = vld [vmem:[%s159 + $0x10] sm:$0xff]
                  %164 = vst [vmem:[%s160 + $0x8] sm:$0xff] %v163
                $region48: #{mobileone_block_forward.3} parent=42 // loop_footer
                  %s158 = sadd.s32 1, %s154
                $region49: #{mobileone_block_forward.3} parent=42 // loop_footer_branch
                  %153 = sbr.rel target = $region45
                $region50: #{mobileone_block_forward.3} parent=42 // loop_exit
                  _
              $region43: #{mobileone_block_forward.3} parent=27 // pred_fallthru
                _
              // Predicated region
              $region51: #{mobileone_block_forward.3} parent=27 // pred_check
                _
              $region52: #{mobileone_block_forward.3} parent=27 // pred_check_branch
                %166 = sbr.rel target = $region54
              $region53: #{mobileone_block_forward.3} parent=27 // pred_region
                _
              $region54: #{mobileone_block_forward.3} parent=27 // pred_fallthru
                _
            $region28: #{mobileone_block_forward.3} parent=23 // pred_fallthru
              _
            // Predicated region
            $region29: #{mobileone_block_forward.3} parent=23 // pred_check
              _
            $region30: #{mobileone_block_forward.3} parent=23 // pred_check_branch
              %137 = sbr.rel target = $region32
            $region31: #{mobileone_block_forward.3} parent=23 // pred_region
              loop: start=0, step=1, limit=1
              $region33: #{mobileone_block_forward.3} parent=31 // loop_pre_header
                _
              $region34: #{mobileone_block_forward.3} parent=31 // loop_header
                %s140 = sphi 0, %s144
                %p141 = scmp.ge.s32.totalorder %s140, 1
                %s145 = sphi %s131, %s131
                %s146 = sphi %s127, %s127
              $region35: #{mobileone_block_forward.3} parent=31 // loop_header_branch
                %143 = sbr.rel (%p141) target = $region39
              $region36: #{mobileone_block_forward.3} parent=31 // loop_body
                %v147 = vld [vmem:[%s145] sm:$0xff]
                %148 = vst [vmem:[%s146] sm:$0xff] %v147
                %v149 = vld [vmem:[%s145 + $0x10] sm:$0xff]
                %150 = vst [vmem:[%s146 + $0x8] sm:$0xff] %v149
              $region37: #{mobileone_block_forward.3} parent=31 // loop_footer
                %s144 = sadd.s32 1, %s140
              $region38: #{mobileone_block_forward.3} parent=31 // loop_footer_branch
                %139 = sbr.rel target = $region34
              $region39: #{mobileone_block_forward.3} parent=31 // loop_exit
                _
            $region32: #{mobileone_block_forward.3} parent=23 // pred_fallthru
              _
          $region24: #{mobileone_block_forward.3} parent=19 // pred_fallthru
            _
          %167 = vnop
        $region20: #{mobileone_block_forward.3} parent=15 // pred_fallthru
          _
        // Predicated region
        $region55: #{mobileone_block_forward.3} parent=15 // pred_check
          %p168 = pneg %p68
        $region56: #{mobileone_block_forward.3} parent=15 // pred_check_branch
          %170 = sbr.rel (%p168) target = $region58
        $region57: #{mobileone_block_forward.3} parent=15 // pred_region
          %p171 = scmp.lt.s32.totalorder %s15, 1
          %s172 = scalar_select %p171, %s15, 1
          %s173 = smul.addr %s172, 2
          %s174 = smul.addr %s173, 8
          %s175 = scalar_lea.vmem %s1, %s174
        $region58: #{mobileone_block_forward.3} parent=15 // pred_fallthru
          _
      $region16: #{mobileone_block_forward.3} parent=5 // pred_fallthru
        _
      %p176 = scmp.le.s32.totalorder 1, %s8
      %p177 = scmp.lt.s32.totalorder %s8, 5
      %p178 = pnand %p176, %p177
      %p179 = pneg %p178
      // Predicated region
      $region59: #{mobileone_block_forward.3} parent=5 // pred_check
        _
      $region60: #{mobileone_block_forward.3} parent=5 // pred_check_branch
        %181 = sbr.rel (%p178) target = $region62
      $region61: #{mobileone_block_forward.3} parent=5 // pred_region
        %s182 = ssub.s32 %s8, 1
        %s183 = sand.u32 %s35, 1
        %s184 = sand.u32 %s35, 1
        %s185 = smul.addr %s184, 16
        %s186 = scalar_lea.vmem [#allocation2], %s185
        // Predicated region
        $region63: #{mobileone_block_forward.3} parent=61 // pred_check
          %p187 = pneg %p48
        $region64: #{mobileone_block_forward.3} parent=61 // pred_check_branch
          %189 = sbr.rel (%p187) target = $region66
        $region65: #{mobileone_block_forward.3} parent=61 // pred_region
          _
        $region66: #{mobileone_block_forward.3} parent=61 // pred_fallthru
          _
        %s190 = sand.u32 %s35, 1
        %s191 = sand.u32 %s35, 1
        %s192 = smul.addr %s191, 16
        %s193 = scalar_lea.vmem [#allocation2], %s192
        %p194 = pneg %p48
        %p195 = pneg %p45
        %p196 = scmp.lt.s32.totalorder %s17, 1
        %s197 = scalar_select %p196, %s17, 1
        %s198 = smul.addr %s197, 2
        %s199 = smul.addr %s198, 8
        %s200 = scalar_lea.vmem %s1, %s199
        %p201 = pneg %p74
        %p202 = pneg %p71
        %p203 = pneg %p102
        %p204 = pneg %p99
        %s205 = sand.u32 %s89, 1
        %s206 = sand.u32 %s89, 1
        %s207 = smul.addr %s206, 16
        %s208 = scalar_lea.vmem [#allocation3], %s207
        %p209 = scmp.lt.s32.totalorder %s17, 1
        %s210 = scalar_select %p209, %s17, 1
        %s211 = smul.addr %s210, 2
        %s212 = smul.addr %s211, 8
        %s213 = scalar_lea.vmem %s1, %s212
        %v214 = vld [vmem:[%s186] sm:$0xff]
        %v215 = vld [vmem:[%s186 + $0x8] sm:$0xff]
        %v216 = vld [vmem:[%s213] sm:$0xff]
        %v217 = vld [vmem:[%s213 + $0x8] sm:$0xff]
        %219 = vset.pattern.permute.xlu0 0
        %220 = vperm.xlu0 %219, %v216
        %v221 = vpop.permute.xlu0 %220
        %224 = vset.pattern.permute.xlu0 0
        %225 = vperm.xlu0 %224, %v217
        %v226 = vpop.permute.xlu0 %225
        %v228 = vmul.f32 %v214, %v221
        %v229 = vmul.f32 %v215, %v226
        %v230 = vmax.f32 %v228, 0.0
        %v231 = vmax.f32 %v229, 0.0
        %232 = vst [vmem:[%s208] sm:$0xff] %v230
        %233 = vst [vmem:[%s208 + $0x8] sm:$0xff] %v231
        %s234 = sand.u32 %s89, 1
        %s235 = sand.u32 %s89, 1
        %s236 = smul.addr %s235, 16
        %s237 = scalar_lea.vmem [#allocation3], %s236
        // Predicated region
        $region67: #{mobileone_block_forward.3} parent=61 // pred_check
          %p238 = pneg %p99
        $region68: #{mobileone_block_forward.3} parent=61 // pred_check_branch
          %240 = sbr.rel (%p238) target = $region70
        $region69: #{mobileone_block_forward.3} parent=61 // pred_region
          %s241 = smul.addr %s17, 4
          %s242 = sadd.s32 %s18, %s241
          %s243 = smul.addr %s242, 8
          %s244 = scalar_lea.vmem %s2, %s243
          // Predicated region
          $region71: #{mobileone_block_forward.3} parent=69 // pred_check
            _
          $region72: #{mobileone_block_forward.3} parent=69 // pred_check_branch
            %246 = sbr.rel (0) target = $region74
          $region73: #{mobileone_block_forward.3} parent=69 // pred_region
            // Predicated region
            $region75: #{mobileone_block_forward.3} parent=73 // pred_check
              _
            $region76: #{mobileone_block_forward.3} parent=73 // pred_check_branch
              %248 = sbr.rel (0) target = $region78
            $region77: #{mobileone_block_forward.3} parent=73 // pred_region
              // Predicated region
              $region90: #{mobileone_block_forward.3} parent=77 // pred_check
                _
              $region91: #{mobileone_block_forward.3} parent=77 // pred_check_branch
                %265 = sbr.rel (0) target = $region93
              $region92: #{mobileone_block_forward.3} parent=77 // pred_region
                loop: start=0, step=1, limit=1
                $region94: #{mobileone_block_forward.3} parent=92 // loop_pre_header
                  _
                $region95: #{mobileone_block_forward.3} parent=92 // loop_header
                  %s267 = sphi 0, %s271
                  %p268 = scmp.ge.s32.totalorder %s267, 1
                  %s272 = sphi %s237, %s237
                  %s273 = sphi %s244, %s244
                $region96: #{mobileone_block_forward.3} parent=92 // loop_header_branch
                  %270 = sbr.rel (%p268) target = $region100
                $region97: #{mobileone_block_forward.3} parent=92 // loop_body
                  %v274 = vld [vmem:[%s272] sm:$0xff]
                  %275 = vst [vmem:[%s273] sm:$0xff] %v274
                  %v276 = vld [vmem:[%s272 + $0x8] sm:$0xff]
                  %277 = vst [vmem:[%s273 + $0x10] sm:$0xff] %v276
                $region98: #{mobileone_block_forward.3} parent=92 // loop_footer
                  %s271 = sadd.s32 1, %s267
                $region99: #{mobileone_block_forward.3} parent=92 // loop_footer_branch
                  %266 = sbr.rel target = $region95
                $region100: #{mobileone_block_forward.3} parent=92 // loop_exit
                  _
              $region93: #{mobileone_block_forward.3} parent=77 // pred_fallthru
                _
              // Predicated region
              $region101: #{mobileone_block_forward.3} parent=77 // pred_check
                _
              $region102: #{mobileone_block_forward.3} parent=77 // pred_check_branch
                %279 = sbr.rel target = $region104
              $region103: #{mobileone_block_forward.3} parent=77 // pred_region
                _
              $region104: #{mobileone_block_forward.3} parent=77 // pred_fallthru
                _
            $region78: #{mobileone_block_forward.3} parent=73 // pred_fallthru
              _
            // Predicated region
            $region79: #{mobileone_block_forward.3} parent=73 // pred_check
              _
            $region80: #{mobileone_block_forward.3} parent=73 // pred_check_branch
              %250 = sbr.rel target = $region82
            $region81: #{mobileone_block_forward.3} parent=73 // pred_region
              loop: start=0, step=1, limit=1
              $region83: #{mobileone_block_forward.3} parent=81 // loop_pre_header
                _
              $region84: #{mobileone_block_forward.3} parent=81 // loop_header
                %s253 = sphi 0, %s257
                %p254 = scmp.ge.s32.totalorder %s253, 1
                %s258 = sphi %s237, %s237
                %s259 = sphi %s244, %s244
              $region85: #{mobileone_block_forward.3} parent=81 // loop_header_branch
                %256 = sbr.rel (%p254) target = $region89
              $region86: #{mobileone_block_forward.3} parent=81 // loop_body
                %v260 = vld [vmem:[%s258] sm:$0xff]
                %261 = vst [vmem:[%s259] sm:$0xff] %v260
                %v262 = vld [vmem:[%s258 + $0x8] sm:$0xff]
                %263 = vst [vmem:[%s259 + $0x10] sm:$0xff] %v262
              $region87: #{mobileone_block_forward.3} parent=81 // loop_footer
                %s257 = sadd.s32 1, %s253
              $region88: #{mobileone_block_forward.3} parent=81 // loop_footer_branch
                %252 = sbr.rel target = $region84
              $region89: #{mobileone_block_forward.3} parent=81 // loop_exit
                _
            $region82: #{mobileone_block_forward.3} parent=73 // pred_fallthru
              _
          $region74: #{mobileone_block_forward.3} parent=69 // pred_fallthru
            _
          %280 = vnop
        $region70: #{mobileone_block_forward.3} parent=61 // pred_fallthru
          _
      $region62: #{mobileone_block_forward.3} parent=5 // pred_fallthru
        _
      %p281 = scmp.le.s32.totalorder 2, %s8
      // Predicated region
      $region105: #{mobileone_block_forward.3} parent=5 // pred_check
        %p282 = pneg %p281
      $region106: #{mobileone_block_forward.3} parent=5 // pred_check_branch
        %284 = sbr.rel (%p282) target = $region108
      $region107: #{mobileone_block_forward.3} parent=5 // pred_region
        %s285 = ssub.s32 %s8, 2
        // Predicated region
        $region109: #{mobileone_block_forward.3} parent=107 // pred_check
          %p286 = pneg %p105
        $region110: #{mobileone_block_forward.3} parent=107 // pred_check_branch
          %288 = sbr.rel (%p286) target = $region112
        $region111: #{mobileone_block_forward.3} parent=107 // pred_region
          %s289 = sand.u32 %s90, 1
          %s290 = sand.u32 %s90, 1
          %s291 = smul.addr %s290, 16
          %s292 = scalar_lea.vmem [#allocation3], %s291
        $region112: #{mobileone_block_forward.3} parent=107 // pred_fallthru
          _
      $region108: #{mobileone_block_forward.3} parent=5 // pred_fallthru
        _
    $region6: #{mobileone_block_forward.3} parent=1 // loop_footer
      %s12 = sadd.s32 1, %s8
    $region7: #{mobileone_block_forward.3} parent=1 // loop_footer_branch
      %7 = sbr.rel target = $region3
    $region8: #{mobileone_block_forward.3} parent=1 // loop_exit
      _

// kernel: mobileone_block_forward.2
$region0: #{mobileone_block_forward.2}
  #allocation0 [shape = 'u32[]', space=smem, size = 0x4, offset = 0x4, fixed_abs, tag = 'smem constant byte address 0x4 - core index']
  #allocation1 [shape = 'u32[144,128]{1,0:T(1,128)}', space=vmem, size = 0x12000, scoped, tag = 'internal scratch']
  #allocation2 [shape = 'f32[16,128]{1,0:T(8,128)}', space=vmem, size = 0x2000, scoped, tag = 'scratch operand']
  %s0 = inlined_call_operand.vmem [shape: f32[9,2,16,256], index: 0, kind: input, shape index: {}]
  %s1 = inlined_call_operand.vmem [shape: f32[9,16,16], index: 1, kind: input, shape index: {}]
  %s2 = inlined_call_operand.vmem [shape: f32[16,1], index: 2, kind: input, shape index: {}]
  %s3 = inlined_call_operand.vmem [shape: f32[2,16,256], index: 3, kind: output, shape index: {0}]
  %s4 = inlined_call_operand.vmem [shape: f32[2,16,1], index: 4, kind: output, shape index: {1}]
  %5 = xla_tuple %s3, %s4
  %s6 = sld [smem:[#allocation0]]
  $region137: #{mobileone_block_forward.2} parent=0
    _
  %s8 = ssub.s32 1, %s6
  %s9 = scalar_select 0, %s8, %s6
  $region1: #{mobileone_block_forward.2} parent=0
    #allocation3 [shape = 'u8[16384]{0}', space=vmem, size = 0x4000, scoped, tag = 'input window, operand 0']
    #allocation4 [shape = 'u8[16384]{0}', space=vmem, size = 0x4000, scoped, tag = 'output window, operand 0']
    loop: start=0, step=1, limit=38
    $region2: #{mobileone_block_forward.2} parent=1 // loop_pre_header
      _
    $region3: #{mobileone_block_forward.2} parent=1 // loop_header
      %s11 = sphi 0, %s15
      %p12 = scmp.ge.s32.totalorder %s11, 38
      %s18 = sphi 0, %s37
      %s19 = sphi 0, %s33
      %s20 = sphi 0, %s29
      %s21 = sphi 0, %s18
      %s22 = sphi 0, %s19
      %s23 = sphi 0, %s20
      %s24 = sphi 0, %s21
      %s25 = sphi 0, %s22
      %s26 = sphi 0, %s23
      %s44 = sphi 0, %s46
      %s47 = sphi 0, %s44
      %s48 = sphi 0, %s47
      %s64 = sphi 0, %s48
      %s68 = sphi 0, %s68
      %s70 = sphi 0, %s68
      %s71 = sphi 0, %s70
      %s85 = sphi 0, %s71
      %s89 = sphi 0, %s89
      %s91 = sphi 0, %s89
      %s92 = sphi 0, %s91
      %s106 = sphi 0, %s92
      %s114 = sphi 0, %s116
      %s117 = sphi 0, %s114
      %s118 = sphi 0, %s117
      %s134 = sphi 0, %s118
      %s140 = sphi 0, %s142
      %s143 = sphi 0, %s140
      %s144 = sphi 0, %s143
      %s160 = sphi 0, %s144
    $region4: #{mobileone_block_forward.2} parent=1 // loop_header_branch
      %14 = sbr.rel (%p12) target = $region8
    $region5: #{mobileone_block_forward.2} parent=1 // loop_body
      %s16 = ssub.s32 %s11, 1
      %s17 = ssub.s32 %s11, 2
      %s27 = sadd.s32 1, %s20
      %p28 = scmp.ge.s32.totalorder %s27, 9
      %s29 = scalar_select %p28, 0, %s27
      %s30 = sadd.s32 1, %s19
      %s31 = scalar_select %p28, %s30, %s19
      %p32 = scmp.ge.s32.totalorder %s31, 2
      %s33 = scalar_select %p32, 0, %s31
      %s34 = sadd.s32 1, %s18
      %s35 = scalar_select %p32, %s34, %s18
      %p36 = scmp.ge.s32.totalorder %s35, 2
      %s37 = scalar_select %p36, 0, %s35
      %s38 = ssub.s32 %s20, %s29
      %s39 = ssub.s32 %s18, %s37
      %s40 = sor.u32 %s38, %s39
      %s41 = ssub.s32 %s19, %s33
      %s42 = sor.u32 %s40, %s41
      %p43 = scmp.eq.s32.totalorder %s42, 0
      %s45 = sadd.s32 %s44, 1
      %s46 = scalar_select %p43, %s44, %s45
      %p49 = pneg %p43
      %p50 = scmp.eq.s32.totalorder %s11, 35
      %p51 = por %p49, %p50
      %p52 = scmp.ne.s32.totalorder %s44, %s47
      %p53 = scmp.eq.s32.totalorder %s11, 0
      %p54 = por %p52, %p53
      %p55 = scmp.ne.s32.totalorder %s44, %s47
      %p56 = scmp.eq.s32.totalorder %s16, 35
      %p57 = por %p55, %p56
      %p58 = scmp.ne.s32.totalorder %s47, %s48
      %p59 = scmp.eq.s32.totalorder %s16, 0
      %p60 = por %p58, %p59
      %p61 = scmp.ne.s32.totalorder %s47, %s48
      %p62 = scmp.eq.s32.totalorder %s17, 35
      %p63 = por %p61, %p62
      %p65 = scmp.ne.s32.totalorder %s48, %s64
      %p66 = scmp.eq.s32.totalorder %s17, 0
      %p67 = por %p65, %p66
      %s69 = sadd.s32 %s68, 1
      %p72 = scmp.eq.s32.totalorder %s11, 35
      %p73 = scmp.ne.s32.totalorder %s68, %s70
      %p74 = scmp.eq.s32.totalorder %s11, 0
      %p75 = por %p73, %p74
      %p76 = scmp.ne.s32.totalorder %s68, %s70
      %p77 = scmp.eq.s32.totalorder %s16, 35
      %p78 = por %p76, %p77
      %p79 = scmp.ne.s32.totalorder %s70, %s71
      %p80 = scmp.eq.s32.totalorder %s16, 0
      %p81 = por %p79, %p80
      %p82 = scmp.ne.s32.totalorder %s70, %s71
      %p83 = scmp.eq.s32.totalorder %s17, 35
      %p84 = por %p82, %p83
      %p86 = scmp.ne.s32.totalorder %s71, %s85
      %p87 = scmp.eq.s32.totalorder %s17, 0
      %p88 = por %p86, %p87
      %s90 = sadd.s32 %s89, 1
      %p93 = scmp.eq.s32.totalorder %s11, 35
      %p94 = scmp.ne.s32.totalorder %s89, %s91
      %p95 = scmp.eq.s32.totalorder %s11, 0
      %p96 = por %p94, %p95
      %p97 = scmp.ne.s32.totalorder %s89, %s91
      %p98 = scmp.eq.s32.totalorder %s16, 35
      %p99 = por %p97, %p98
      %p100 = scmp.ne.s32.totalorder %s91, %s92
      %p101 = scmp.eq.s32.totalorder %s16, 0
      %p102 = por %p100, %p101
      %p103 = scmp.ne.s32.totalorder %s91, %s92
      %p104 = scmp.eq.s32.totalorder %s17, 35
      %p105 = por %p103, %p104
      %p107 = scmp.ne.s32.totalorder %s92, %s106
      %p108 = scmp.eq.s32.totalorder %s17, 0
      %p109 = por %p107, %p108
      %s110 = ssub.s32 %s18, %s37
      %s111 = ssub.s32 %s19, %s33
      %s112 = sor.u32 %s110, %s111
      %p113 = scmp.eq.s32.totalorder %s112, 0
      %s115 = sadd.s32 %s114, 1
      %s116 = scalar_select %p113, %s114, %s115
      %p119 = pneg %p113
      %p120 = scmp.eq.s32.totalorder %s11, 35
      %p121 = por %p119, %p120
      %p122 = scmp.ne.s32.totalorder %s114, %s117
      %p123 = scmp.eq.s32.totalorder %s11, 0
      %p124 = por %p122, %p123
      %p125 = scmp.ne.s32.totalorder %s114, %s117
      %p126 = scmp.eq.s32.totalorder %s16, 35
      %p127 = por %p125, %p126
      %p128 = scmp.ne.s32.totalorder %s117, %s118
      %p129 = scmp.eq.s32.totalorder %s16, 0
      %p130 = por %p128, %p129
      %p131 = scmp.ne.s32.totalorder %s117, %s118
      %p132 = scmp.eq.s32.totalorder %s17, 35
      %p133 = por %p131, %p132
      %p135 = scmp.ne.s32.totalorder %s118, %s134
      %p136 = scmp.eq.s32.totalorder %s17, 0
      %p137 = por %p135, %p136
      %s138 = ssub.s32 %s18, %s37
      %p139 = scmp.eq.s32.totalorder %s138, 0
      %s141 = sadd.s32 %s140, 1
      %s142 = scalar_select %p139, %s140, %s141
      %p145 = pneg %p139
      %p146 = scmp.eq.s32.totalorder %s11, 35
      %p147 = por %p145, %p146
      %p148 = scmp.ne.s32.totalorder %s140, %s143
      %p149 = scmp.eq.s32.totalorder %s11, 0
      %p150 = por %p148, %p149
      %p151 = scmp.ne.s32.totalorder %s140, %s143
      %p152 = scmp.eq.s32.totalorder %s16, 35
      %p153 = por %p151, %p152
      %p154 = scmp.ne.s32.totalorder %s143, %s144
      %p155 = scmp.eq.s32.totalorder %s16, 0
      %p156 = por %p154, %p155
      %p157 = scmp.ne.s32.totalorder %s143, %s144
      %p158 = scmp.eq.s32.totalorder %s17, 35
      %p159 = por %p157, %p158
      %p161 = scmp.ne.s32.totalorder %s144, %s160
      %p162 = scmp.eq.s32.totalorder %s17, 0
      %p163 = por %p161, %p162
      %p164 = scmp.le.s32.totalorder 1, %s11
      %p165 = scmp.lt.s32.totalorder %s11, 37
      %p166 = pnand %p164, %p165
      %p167 = pneg %p166
      // Predicated region
      $region9: #{mobileone_block_forward.2} parent=5 // pred_check
        _
      $region10: #{mobileone_block_forward.2} parent=5 // pred_check_branch
        %169 = sbr.rel (%p166) target = $region12
      $region11: #{mobileone_block_forward.2} parent=5 // pred_region
        %s170 = ssub.s32 %s11, 1
        // Predicated region
        $region13: #{mobileone_block_forward.2} parent=11 // pred_check
          %p171 = pneg %p81
        $region14: #{mobileone_block_forward.2} parent=11 // pred_check_branch
          %173 = sbr.rel (%p171) target = $region16
        $region15: #{mobileone_block_forward.2} parent=11 // pred_region
          _
        $region16: #{mobileone_block_forward.2} parent=11 // pred_fallthru
          _
        // Predicated region
        $region17: #{mobileone_block_forward.2} parent=11 // pred_check
          %p174 = pneg %p102
        $region18: #{mobileone_block_forward.2} parent=11 // pred_check_branch
          %176 = sbr.rel (%p174) target = $region20
        $region19: #{mobileone_block_forward.2} parent=11 // pred_region
          _
        $region20: #{mobileone_block_forward.2} parent=11 // pred_fallthru
          _
      $region12: #{mobileone_block_forward.2} parent=5 // pred_fallthru
        _
      %p177 = scmp.lt.s32.totalorder %s11, 36
      // Predicated region
      $region21: #{mobileone_block_forward.2} parent=5 // pred_check
        %p178 = pneg %p177
      $region22: #{mobileone_block_forward.2} parent=5 // pred_check_branch
        %180 = sbr.rel (%p178) target = $region24
      $region23: #{mobileone_block_forward.2} parent=5 // pred_region
        // Predicated region
        $region25: #{mobileone_block_forward.2} parent=23 // pred_check
          %p181 = pneg %p54
        $region26: #{mobileone_block_forward.2} parent=23 // pred_check_branch
          %183 = sbr.rel (%p181) target = $region28
        $region27: #{mobileone_block_forward.2} parent=23 // pred_region
          %s184 = sand.u32 %s44, 1
          %s185 = sand.u32 %s44, 1
          %s186 = smul.addr %s185, 16
          %s187 = scalar_lea.vmem [#allocation3], %s186
          %s188 = smul.addr %s18, 4
          %s189 = sadd.s32 %s19, %s188
          %s190 = smul.addr %s20, 8
          %s191 = sadd.s32 %s189, %s190
          %s192 = smul.addr %s191, 8
          %s193 = scalar_lea.vmem %s0, %s192
          // Predicated region
          $region29: #{mobileone_block_forward.2} parent=27 // pred_check
            _
          $region30: #{mobileone_block_forward.2} parent=27 // pred_check_branch
            %195 = sbr.rel (0) target = $region32
          $region31: #{mobileone_block_forward.2} parent=27 // pred_region
            // Predicated region
            $region33: #{mobileone_block_forward.2} parent=31 // pred_check
              _
            $region34: #{mobileone_block_forward.2} parent=31 // pred_check_branch
              %197 = sbr.rel (0) target = $region36
            $region35: #{mobileone_block_forward.2} parent=31 // pred_region
              // Predicated region
              $region48: #{mobileone_block_forward.2} parent=35 // pred_check
                _
              $region49: #{mobileone_block_forward.2} parent=35 // pred_check_branch
                %214 = sbr.rel (0) target = $region51
              $region50: #{mobileone_block_forward.2} parent=35 // pred_region
                loop: start=0, step=1, limit=1
                $region52: #{mobileone_block_forward.2} parent=50 // loop_pre_header
                  _
                $region53: #{mobileone_block_forward.2} parent=50 // loop_header
                  %s216 = sphi 0, %s220
                  %p217 = scmp.ge.s32.totalorder %s216, 1
                  %s221 = sphi %s193, %s193
                  %s222 = sphi %s187, %s187
                $region54: #{mobileone_block_forward.2} parent=50 // loop_header_branch
                  %219 = sbr.rel (%p217) target = $region58
                $region55: #{mobileone_block_forward.2} parent=50 // loop_body
                  %v223 = vld [vmem:[%s221] sm:$0xff]
                  %224 = vst [vmem:[%s222] sm:$0xff] %v223
                  %v225 = vld [vmem:[%s221 + $0x10] sm:$0xff]
                  %226 = vst [vmem:[%s222 + $0x8] sm:$0xff] %v225
                $region56: #{mobileone_block_forward.2} parent=50 // loop_footer
                  %s220 = sadd.s32 1, %s216
                $region57: #{mobileone_block_forward.2} parent=50 // loop_footer_branch
                  %215 = sbr.rel target = $region53
                $region58: #{mobileone_block_forward.2} parent=50 // loop_exit
                  _
              $region51: #{mobileone_block_forward.2} parent=35 // pred_fallthru
                _
              // Predicated region
              $region59: #{mobileone_block_forward.2} parent=35 // pred_check
                _
              $region60: #{mobileone_block_forward.2} parent=35 // pred_check_branch
                %228 = sbr.rel target = $region62
              $region61: #{mobileone_block_forward.2} parent=35 // pred_region
                _
              $region62: #{mobileone_block_forward.2} parent=35 // pred_fallthru
                _
            $region36: #{mobileone_block_forward.2} parent=31 // pred_fallthru
              _
            // Predicated region
            $region37: #{mobileone_block_forward.2} parent=31 // pred_check
              _
            $region38: #{mobileone_block_forward.2} parent=31 // pred_check_branch
              %199 = sbr.rel target = $region40
            $region39: #{mobileone_block_forward.2} parent=31 // pred_region
              loop: start=0, step=1, limit=1
              $region41: #{mobileone_block_forward.2} parent=39 // loop_pre_header
                _
              $region42: #{mobileone_block_forward.2} parent=39 // loop_header
                %s202 = sphi 0, %s206
                %p203 = scmp.ge.s32.totalorder %s202, 1
                %s207 = sphi %s193, %s193
                %s208 = sphi %s187, %s187
              $region43: #{mobileone_block_forward.2} parent=39 // loop_header_branch
                %205 = sbr.rel (%p203) target = $region47
              $region44: #{mobileone_block_forward.2} parent=39 // loop_body
                %v209 = vld [vmem:[%s207] sm:$0xff]
                %210 = vst [vmem:[%s208] sm:$0xff] %v209
                %v211 = vld [vmem:[%s207 + $0x10] sm:$0xff]
                %212 = vst [vmem:[%s208 + $0x8] sm:$0xff] %v211
              $region45: #{mobileone_block_forward.2} parent=39 // loop_footer
                %s206 = sadd.s32 1, %s202
              $region46: #{mobileone_block_forward.2} parent=39 // loop_footer_branch
                %201 = sbr.rel target = $region42
              $region47: #{mobileone_block_forward.2} parent=39 // loop_exit
                _
            $region40: #{mobileone_block_forward.2} parent=31 // pred_fallthru
              _
          $region32: #{mobileone_block_forward.2} parent=27 // pred_fallthru
            _
          %229 = vnop
        $region28: #{mobileone_block_forward.2} parent=23 // pred_fallthru
          _
      $region24: #{mobileone_block_forward.2} parent=5 // pred_fallthru
        _
      %p230 = scmp.le.s32.totalorder 1, %s11
      %p231 = scmp.lt.s32.totalorder %s11, 37
      %p232 = pnand %p230, %p231
      %p233 = pneg %p232
      // Predicated region
      $region63: #{mobileone_block_forward.2} parent=5 // pred_check
        _
      $region64: #{mobileone_block_forward.2} parent=5 // pred_check_branch
        %235 = sbr.rel (%p232) target = $region66
      $region65: #{mobileone_block_forward.2} parent=5 // pred_region
        %s236 = ssub.s32 %s11, 1
        %s237 = sand.u32 %s47, 1
        %s238 = sand.u32 %s47, 1
        %s239 = smul.addr %s238, 16
        %s240 = scalar_lea.vmem [#allocation3], %s239
        // Predicated region
        $region67: #{mobileone_block_forward.2} parent=65 // pred_check
          %p241 = pneg %p60
        $region68: #{mobileone_block_forward.2} parent=65 // pred_check_branch
          %243 = sbr.rel (%p241) target = $region70
        $region69: #{mobileone_block_forward.2} parent=65 // pred_region
          _
        $region70: #{mobileone_block_forward.2} parent=65 // pred_fallthru
          _
        %s244 = sand.u32 %s47, 1
        %s245 = sand.u32 %s47, 1
        %s246 = smul.addr %s245, 16
        %s247 = scalar_lea.vmem [#allocation3], %s246
        %p248 = pneg %p60
        %p249 = pneg %p57
        %p250 = pneg %p81
        %p251 = pneg %p78
        %p252 = pneg %p102
        %p253 = pneg %p99
        %p254 = pneg %p130
        %p255 = pneg %p127
        %s256 = sand.u32 %s117, 1
        %s257 = sand.u32 %s117, 1
        %s258 = smul.addr %s257, 16
        %s259 = scalar_lea.vmem [#allocation4], %s258
        %p260 = pneg %p156
        %p261 = pneg %p153
        %p262 = scmp.lt.s32.totalorder %s21, 1
        %s263 = scalar_select %p262, %s21, 1
        %s264 = smul.addr %s263, 2
        %s265 = smul.addr %s264, 8
        %s266 = scalar_lea.vmem %s4, %s265
        %p267 = scmp.lt.s32.totalorder %s21, 1
        %s268 = scalar_select %p267, %s21, 1
        %s269 = smul.addr %s268, 2
        %s270 = smul.addr %s269, 8
        %s271 = scalar_lea.vmem %s4, %s270
        %p272 = scmp.eq.s32.totalorder %s23, 0
        // Predicated region
        $region71: #{mobileone_block_forward.2} parent=65 // pred_check
          %p273 = pneg %p272
        $region72: #{mobileone_block_forward.2} parent=65 // pred_check_branch
          %275 = sbr.rel (%p273) target = $region74
        $region73: #{mobileone_block_forward.2} parent=65 // pred_region
          %276 = vst [vmem:[#allocation2] sm:$0xff] 0.0
          %277 = vst [vmem:[#allocation2 + $0x8] sm:$0xff] 0.0
        $region74: #{mobileone_block_forward.2} parent=65 // pred_fallthru
          _
        %p278 = scmp.eq.s32.totalorder %s22, 0
        %p279 = pnand %p278, %p272
        %p280 = pneg %p279
        // Predicated region
        $region75: #{mobileone_block_forward.2} parent=65 // pred_check
          _
        $region76: #{mobileone_block_forward.2} parent=65 // pred_check_branch
          %282 = sbr.rel (%p279) target = $region78
        $region77: #{mobileone_block_forward.2} parent=65 // pred_region
          %vm283 = vcmask 7168
          %284 = vst.msk [vmem:[%s271] sm:$0xff] %vm283, 0.0
          %285 = vst.msk [vmem:[%s271 + $0x8] sm:$0xff] %vm283, 0.0
        $region78: #{mobileone_block_forward.2} parent=65 // pred_fallthru
          _
        %v286 = vld [vmem:[%s240] sm:$0xff]
        %v287 = vld [vmem:[%s240 + $0x8] sm:$0xff]
        %s288 = smul.u32 %s23, 16
        %s289 = scalar_lea.vmem %s1, %s288
        %v290 = vld [vmem:[%s289] sm:$0xff]
        %v291 = vld [vmem:[%s289 + $0x8] sm:$0xff]
        %v292 = vld [vmem:[#allocation2] sm:$0xff]
        %v293 = vld [vmem:[#allocation2 + $0x8] sm:$0xff]
        %vm294 = vcmask 130048
        %v296 = vsel %vm294, %v290, 0
        %v299 = vsel %vm294, %v291, 0
        %301 = vmatprep.subr.mxu0 0.0
        %v302 = vand.u32 %v286, 4294901760
        %303 = vmatpush1.msra.mxu0 %v302
        %304 = vmatprep.subr.mxu0 0.0
        %v305 = vand.u32 %v287, 4294901760
        %306 = vmatpush1.msra.mxu0 %v305
        %307 = vmatprep.subr.mxu0 0.0
        %308 = vmatpush1.msra.mxu0 0.0
        %309 = vmatprep.subr.mxu0 0.0
        %310 = vmatpush1.msra.mxu0 0.0
        %311 = vmatprep.subr.mxu0 0.0
        %312 = vmatpush1.msra.mxu0 0.0
        %313 = vmatprep.subr.mxu0 0.0
        %314 = vmatpush1.msra.mxu0 0.0
        %315 = vmatprep.subr.mxu0 0.0
        %316 = vmatpush1.msra.mxu0 0.0
        %317 = vmatprep.subr.mxu0 0.0
        %318 = vmatpush1.msra.mxu0 0.0
        %319 = vmatprep.subr.mxu0 0.0
        %320 = vmatpush1.msra.mxu0 0.0
        %321 = vmatprep.subr.mxu0 0.0
        %322 = vmatpush1.msra.mxu0 0.0
        %323 = vmatprep.subr.mxu0 0.0
        %324 = vmatpush1.msra.mxu0 0.0
        %325 = vmatprep.subr.mxu0 0.0
        %326 = vmatpush1.msra.mxu0 0.0
        %327 = vmatprep.subr.mxu0 0.0
        %328 = vmatpush1.msra.mxu0 0.0
        %329 = vmatprep.subr.mxu0 0.0
        %330 = vmatpush1.msra.mxu0 0.0
        %331 = vmatprep.subr.mxu0 0.0
        %332 = vmatpush1.msra.mxu0 0.0
        %333 = vmatprep.subr.mxu0 0.0
        %334 = vmatpush1.msra.mxu0 0.0
        %335 = vmatprep.subr.mxu0 0.0
        %336 = vmatpush1.msra.mxu0 0.0
        %337 = vmatprep.subr.mxu0 0.0
        %338 = vmatpush1.msra.mxu0 0.0
        %339 = vmatprep.subr.mxu0 0.0
        %340 = vmatpush1.msra.mxu0 0.0
        %341 = vmatprep.subr.mxu0 0.0
        %342 = vmatpush1.msra.mxu0 0.0
        %343 = vmatprep.subr.mxu0 0.0
        %344 = vmatpush1.msra.mxu0 0.0
        %345 = vmatprep.subr.mxu0 0.0
        %346 = vmatpush1.msra.mxu0 0.0
        %347 = vmatprep.subr.mxu0 0.0
        %348 = vmatpush1.msra.mxu0 0.0
        %349 = vmatprep.subr.mxu0 0.0
        %350 = vmatpush1.msra.mxu0 0.0
        %351 = vmatprep.subr.mxu0 0.0
        %352 = vmatpush1.msra.mxu0 0.0
        %353 = vmatprep.subr.mxu0 0.0
        %354 = vmatpush1.msra.mxu0 0.0
        %355 = vmatprep.subr.mxu0 0.0
        %356 = vmatpush1.msra.mxu0 0.0
        %357 = vmatprep.subr.mxu0 0.0
        %358 = vmatpush1.msra.mxu0 0.0
        %359 = vmatprep.subr.mxu0 0.0
        %360 = vmatpush1.msra.mxu0 0.0
        %361 = vmatprep.subr.mxu0 0.0
        %362 = vmatpush1.msra.mxu0 0.0
        %363 = vmatprep.subr.mxu0 0.0
        %364 = vmatpush1.msra.mxu0 0.0
        %365 = vmatprep.subr.mxu0 0.0
        %366 = vmatpush1.msra.mxu0 0.0
        %367 = vmatprep.mubr.f32.mxu0 0.0
        %v368 = vand.u32 %v296, 4294901760
        %v369 = vsub.f32 %v296, %v368
        %v370 = vand.u32 %v369, 4294901760
        %v371 = vsub.f32 %v369, %v370
        %v372 = vand.u32 %v371, 4294901760
        %373 = vmatmul.mubr.f32.gmra.mrb[0].mxu0 %v372
        %v374 = vpop.f32.mrb[0].mxu0
        %v375 = vadd.f32 0.0, %v374
        %v376 = vpop.f32.mrb[0].mxu0
        %377 = vmatprep.mubr.f32.mxu0 0.0
        %v378 = vand.u32 %v299, 4294901760
        %v379 = vsub.f32 %v299, %v378
        %v380 = vand.u32 %v379, 4294901760
        %v381 = vsub.f32 %v379, %v380
        %v382 = vand.u32 %v381, 4294901760
        %383 = vmatmul.mubr.f32.gmra.mrb[0].mxu0 %v382
        %v384 = vpop.f32.mrb[0].mxu0
        %v385 = vadd.f32 0.0, %v384
        %v386 = vpop.f32.mrb[0].mxu0
        %387 = vdwg.mxu0
        %388 = vmatprep.subr.mxu0 0.0
        %v389 = vand.u32 %v286, 4294901760
        %v390 = vsub.f32 %v286, %v389
        %v391 = vand.u32 %v390, 4294901760
        %v392 = vsub.f32 %v390, %v391
        %v393 = vand.u32 %v392, 4294901760
        %394 = vmatpush1.msra.mxu0 %v393
        %395 = vmatprep.subr.mxu0 0.0
        %v396 = vand.u32 %v287, 4294901760
        %v397 = vsub.f32 %v287, %v396
        %v398 = vand.u32 %v397, 4294901760
        %v399 = vsub.f32 %v397, %v398
        %v400 = vand.u32 %v399, 4294901760
        %401 = vmatpush1.msra.mxu0 %v400
        %402 = vmatprep.subr.mxu0 0.0
        %403 = vmatpush1.msra.mxu0 0.0
        %404 = vmatprep.subr.mxu0 0.0
        %405 = vmatpush1.msra.mxu0 0.0
        %406 = vmatprep.subr.mxu0 0.0
        %407 = vmatpush1.msra.mxu0 0.0
        %408 = vmatprep.subr.mxu0 0.0
        %409 = vmatpush1.msra.mxu0 0.0
        %410 = vmatprep.subr.mxu0 0.0
        %411 = vmatpush1.msra.mxu0 0.0
        %412 = vmatprep.subr.mxu0 0.0
        %413 = vmatpush1.msra.mxu0 0.0
        %414 = vmatprep.subr.mxu0 0.0
        %415 = vmatpush1.msra.mxu0 0.0
        %416 = vmatprep.subr.mxu0 0.0
        %417 = vmatpush1.msra.mxu0 0.0
        %418 = vmatprep.subr.mxu0 0.0
        %419 = vmatpush1.msra.mxu0 0.0
        %420 = vmatprep.subr.mxu0 0.0
        %421 = vmatpush1.msra.mxu0 0.0
        %422 = vmatprep.subr.mxu0 0.0
        %423 = vmatpush1.msra.mxu0 0.0
        %424 = vmatprep.subr.mxu0 0.0
        %425 = vmatpush1.msra.mxu0 0.0
        %426 = vmatprep.subr.mxu0 0.0
        %427 = vmatpush1.msra.mxu0 0.0
        %428 = vmatprep.subr.mxu0 0.0
        %429 = vmatpush1.msra.mxu0 0.0
        %430 = vmatprep.subr.mxu0 0.0
        %431 = vmatpush1.msra.mxu0 0.0
        %432 = vmatprep.subr.mxu0 0.0
        %433 = vmatpush1.msra.mxu0 0.0
        %434 = vmatprep.subr.mxu0 0.0
        %435 = vmatpush1.msra.mxu0 0.0
        %436 = vmatprep.subr.mxu0 0.0
        %437 = vmatpush1.msra.mxu0 0.0
        %438 = vmatprep.subr.mxu0 0.0
        %439 = vmatpush1.msra.mxu0 0.0
        %440 = vmatprep.subr.mxu0 0.0
        %441 = vmatpush1.msra.mxu0 0.0
        %442 = vmatprep.subr.mxu0 0.0
        %443 = vmatpush1.msra.mxu0 0.0
        %444 = vmatprep.subr.mxu0 0.0
        %445 = vmatpush1.msra.mxu0 0.0
        %446 = vmatprep.subr.mxu0 0.0
        %447 = vmatpush1.msra.mxu0 0.0
        %448 = vmatprep.subr.mxu0 0.0
        %449 = vmatpush1.msra.mxu0 0.0
        %450 = vmatprep.subr.mxu0 0.0
        %451 = vmatpush1.msra.mxu0 0.0
        %452 = vmatprep.subr.mxu0 0.0
        %453 = vmatpush1.msra.mxu0 0.0
        %454 = vmatprep.subr.mxu0 0.0
        %455 = vmatpush1.msra.mxu0 0.0
        %456 = vmatprep.subr.mxu0 0.0
        %457 = vmatpush1.msra.mxu0 0.0
        %458 = vmatprep.subr.mxu0 0.0
        %459 = vmatpush1.msra.mxu0 0.0
        %460 = vmatprep.subr.mxu0 0.0
        %461 = vmatpush1.msra.mxu0 0.0
        %462 = vmatprep.mubr.f32.mxu0 0.0
        %v463 = vand.u32 %v296, 4294901760
        %464 = vmatmul.mubr.f32.gmra.mrb[0].mxu0 %v463
        %v465 = vpop.f32.mrb[0].mxu0
        %v466 = vadd.f32 %v375, %v465
        %v467 = vpop.f32.mrb[0].mxu0
        %468 = vmatprep.mubr.f32.mxu0 0.0
        %v469 = vand.u32 %v299, 4294901760
        %470 = vmatmul.mubr.f32.gmra.mrb[0].mxu0 %v469
        %v471 = vpop.f32.mrb[0].mxu0
        %v472 = vadd.f32 %v385, %v471
        %v473 = vpop.f32.mrb[0].mxu0
        %474 = vdwg.mxu0
        %475 = vmatprep.subr.mxu0 0.0
        %v476 = vand.u32 %v286, 4294901760
        %v477 = vsub.f32 %v286, %v476
        %478 = vmatpush1.msra.mxu0 %v477
        %479 = vmatprep.subr.mxu0 0.0
        %v480 = vand.u32 %v287, 4294901760
        %v481 = vsub.f32 %v287, %v480
        %482 = vmatpush1.msra.mxu0 %v481
        %483 = vmatprep.subr.mxu0 0.0
        %484 = vmatpush1.msra.mxu0 0.0
        %485 = vmatprep.subr.mxu0 0.0
        %486 = vmatpush1.msra.mxu0 0.0
        %487 = vmatprep.subr.mxu0 0.0
        %488 = vmatpush1.msra.mxu0 0.0
        %489 = vmatprep.subr.mxu0 0.0
        %490 = vmatpush1.msra.mxu0 0.0
        %491 = vmatprep.subr.mxu0 0.0
        %492 = vmatpush1.msra.mxu0 0.0
        %493 = vmatprep.subr.mxu0 0.0
        %494 = vmatpush1.msra.mxu0 0.0
        %495 = vmatprep.subr.mxu0 0.0
        %496 = vmatpush1.msra.mxu0 0.0
        %497 = vmatprep.subr.mxu0 0.0
        %498 = vmatpush1.msra.mxu0 0.0
        %499 = vmatprep.subr.mxu0 0.0
        %500 = vmatpush1.msra.mxu0 0.0
        %501 = vmatprep.subr.mxu0 0.0
        %502 = vmatpush1.msra.mxu0 0.0
        %503 = vmatprep.subr.mxu0 0.0
        %504 = vmatpush1.msra.mxu0 0.0
        %505 = vmatprep.subr.mxu0 0.0
        %506 = vmatpush1.msra.mxu0 0.0
        %507 = vmatprep.subr.mxu0 0.0
        %508 = vmatpush1.msra.mxu0 0.0
        %509 = vmatprep.subr.mxu0 0.0
        %510 = vmatpush1.msra.mxu0 0.0
        %511 = vmatprep.subr.mxu0 0.0
        %512 = vmatpush1.msra.mxu0 0.0
        %513 = vmatprep.subr.mxu0 0.0
        %514 = vmatpush1.msra.mxu0 0.0
        %515 = vmatprep.subr.mxu0 0.0
        %516 = vmatpush1.msra.mxu0 0.0
        %517 = vmatprep.subr.mxu0 0.0
        %518 = vmatpush1.msra.mxu0 0.0
        %519 = vmatprep.subr.mxu0 0.0
        %520 = vmatpush1.msra.mxu0 0.0
        %521 = vmatprep.subr.mxu0 0.0
        %522 = vmatpush1.msra.mxu0 0.0
        %523 = vmatprep.subr.mxu0 0.0
        %524 = vmatpush1.msra.mxu0 0.0
        %525 = vmatprep.subr.mxu0 0.0
        %526 = vmatpush1.msra.mxu0 0.0
        %527 = vmatprep.subr.mxu0 0.0
        %528 = vmatpush1.msra.mxu0 0.0
        %529 = vmatprep.subr.mxu0 0.0
        %530 = vmatpush1.msra.mxu0 0.0
        %531 = vmatprep.subr.mxu0 0.0
        %532 = vmatpush1.msra.mxu0 0.0
        %533 = vmatprep.subr.mxu0 0.0
        %534 = vmatpush1.msra.mxu0 0.0
        %535 = vmatprep.subr.mxu0 0.0
        %536 = vmatpush1.msra.mxu0 0.0
        %537 = vmatprep.subr.mxu0 0.0
        %538 = vmatpush1.msra.mxu0 0.0
        %539 = vmatprep.subr.mxu0 0.0
        %540 = vmatpush1.msra.mxu0 0.0
        %541 = vmatprep.subr.mxu0 0.0
        %542 = vmatpush1.msra.mxu0 0.0
        %543 = vmatprep.mubr.f32.mxu0 0.0
        %v544 = vand.u32 %v296, 4294901760
        %v545 = vsub.f32 %v296, %v544
        %546 = vmatmul.mubr.f32.gmra.mrb[0].mxu0 %v545
        %v547 = vpop.f32.mrb[0].mxu0
        %v548 = vadd.f32 %v466, %v547
        %v549 = vpop.f32.mrb[0].mxu0
        %550 = vmatprep.mubr.f32.mxu0 0.0
        %v551 = vand.u32 %v299, 4294901760
        %v552 = vsub.f32 %v299, %v551
        %553 = vmatmul.mubr.f32.gmra.mrb[0].mxu0 %v552
        %v554 = vpop.f32.mrb[0].mxu0
        %v555 = vadd.f32 %v472, %v554
        %v556 = vpop.f32.mrb[0].mxu0
        %557 = vdwg.mxu0
        %558 = vmatprep.subr.mxu0 0.0
        %v559 = vand.u32 %v286, 4294901760
        %560 = vmatpush1.msra.mxu0 %v559
        %561 = vmatprep.subr.mxu0 0.0
        %v562 = vand.u32 %v287, 4294901760
        %563 = vmatpush1.msra.mxu0 %v562
        %564 = vmatprep.subr.mxu0 0.0
        %565 = vmatpush1.msra.mxu0 0.0
        %566 = vmatprep.subr.mxu0 0.0
        %567 = vmatpush1.msra.mxu0 0.0
        %568 = vmatprep.subr.mxu0 0.0
        %569 = vmatpush1.msra.mxu0 0.0
        %570 = vmatprep.subr.mxu0 0.0
        %571 = vmatpush1.msra.mxu0 0.0
        %572 = vmatprep.subr.mxu0 0.0
        %573 = vmatpush1.msra.mxu0 0.0
        %574 = vmatprep.subr.mxu0 0.0
        %575 = vmatpush1.msra.mxu0 0.0
        %576 = vmatprep.subr.mxu0 0.0
        %577 = vmatpush1.msra.mxu0 0.0
        %578 = vmatprep.subr.mxu0 0.0
        %579 = vmatpush1.msra.mxu0 0.0
        %580 = vmatprep.subr.mxu0 0.0
        %581 = vmatpush1.msra.mxu0 0.0
        %582 = vmatprep.subr.mxu0 0.0
        %583 = vmatpush1.msra.mxu0 0.0
        %584 = vmatprep.subr.mxu0 0.0
        %585 = vmatpush1.msra.mxu0 0.0
        %586 = vmatprep.subr.mxu0 0.0
        %587 = vmatpush1.msra.mxu0 0.0
        %588 = vmatprep.subr.mxu0 0.0
        %589 = vmatpush1.msra.mxu0 0.0
        %590 = vmatprep.subr.mxu0 0.0
        %591 = vmatpush1.msra.mxu0 0.0
        %592 = vmatprep.subr.mxu0 0.0
        %593 = vmatpush1.msra.mxu0 0.0
        %594 = vmatprep.subr.mxu0 0.0
        %595 = vmatpush1.msra.mxu0 0.0
        %596 = vmatprep.subr.mxu0 0.0
        %597 = vmatpush1.msra.mxu0 0.0
        %598 = vmatprep.subr.mxu0 0.0
        %599 = vmatpush1.msra.mxu0 0.0
        %600 = vmatprep.subr.mxu0 0.0
        %601 = vmatpush1.msra.mxu0 0.0
        %602 = vmatprep.subr.mxu0 0.0
        %603 = vmatpush1.msra.mxu0 0.0
        %604 = vmatprep.subr.mxu0 0.0
        %605 = vmatpush1.msra.mxu0 0.0
        %606 = vmatprep.subr.mxu0 0.0
        %607 = vmatpush1.msra.mxu0 0.0
        %608 = vmatprep.subr.mxu0 0.0
        %609 = vmatpush1.msra.mxu0 0.0
        %610 = vmatprep.subr.mxu0 0.0
        %611 = vmatpush1.msra.mxu0 0.0
        %612 = vmatprep.subr.mxu0 0.0
        %613 = vmatpush1.msra.mxu0 0.0
        %614 = vmatprep.subr.mxu0 0.0
        %615 = vmatpush1.msra.mxu0 0.0
        %616 = vmatprep.subr.mxu0 0.0
        %617 = vmatpush1.msra.mxu0 0.0
        %618 = vmatprep.subr.mxu0 0.0
        %619 = vmatpush1.msra.mxu0 0.0
        %620 = vmatprep.subr.mxu0 0.0
        %621 = vmatpush1.msra.mxu0 0.0
        %622 = vmatprep.subr.mxu0 0.0
        %623 = vmatpush1.msra.mxu0 0.0
        %624 = vmatprep.mubr.f32.mxu0 0.0
        %v625 = vand.u32 %v296, 4294901760
        %v626 = vsub.f32 %v296, %v625
        %v627 = vand.u32 %v626, 4294901760
        %628 = vmatmul.mubr.f32.gmra.mrb[0].mxu0 %v627
        %v629 = vpop.f32.mrb[0].mxu0
        %v630 = vadd.f32 %v548, %v629
        %v631 = vpop.f32.mrb[0].mxu0
        %632 = vmatprep.mubr.f32.mxu0 0.0
        %v633 = vand.u32 %v299, 4294901760
        %v634 = vsub.f32 %v299, %v633
        %v635 = vand.u32 %v634, 4294901760
        %636 = vmatmul.mubr.f32.gmra.mrb[0].mxu0 %v635
        %v637 = vpop.f32.mrb[0].mxu0
        %v638 = vadd.f32 %v555, %v637
        %v639 = vpop.f32.mrb[0].mxu0
        %640 = vdwg.mxu0
        %641 = vmatprep.subr.mxu0 0.0
        %v642 = vand.u32 %v286, 4294901760
        %v643 = vsub.f32 %v286, %v642
        %v644 = vand.u32 %v643, 4294901760
        %645 = vmatpush1.msra.mxu0 %v644
        %646 = vmatprep.subr.mxu0 0.0
        %v647 = vand.u32 %v287, 4294901760
        %v648 = vsub.f32 %v287, %v647
        %v649 = vand.u32 %v648, 4294901760
        %650 = vmatpush1.msra.mxu0 %v649
        %651 = vmatprep.subr.mxu0 0.0
        %652 = vmatpush1.msra.mxu0 0.0
        %653 = vmatprep.subr.mxu0 0.0
        %654 = vmatpush1.msra.mxu0 0.0
        %655 = vmatprep.subr.mxu0 0.0
        %656 = vmatpush1.msra.mxu0 0.0
        %657 = vmatprep.subr.mxu0 0.0
        %658 = vmatpush1.msra.mxu0 0.0
        %659 = vmatprep.subr.mxu0 0.0
        %660 = vmatpush1.msra.mxu0 0.0
        %661 = vmatprep.subr.mxu0 0.0
        %662 = vmatpush1.msra.mxu0 0.0
        %663 = vmatprep.subr.mxu0 0.0
        %664 = vmatpush1.msra.mxu0 0.0
        %665 = vmatprep.subr.mxu0 0.0
        %666 = vmatpush1.msra.mxu0 0.0
        %667 = vmatprep.subr.mxu0 0.0
        %668 = vmatpush1.msra.mxu0 0.0
        %669 = vmatprep.subr.mxu0 0.0
        %670 = vmatpush1.msra.mxu0 0.0
        %671 = vmatprep.subr.mxu0 0.0
        %672 = vmatpush1.msra.mxu0 0.0
        %673 = vmatprep.subr.mxu0 0.0
        %674 = vmatpush1.msra.mxu0 0.0
        %675 = vmatprep.subr.mxu0 0.0
        %676 = vmatpush1.msra.mxu0 0.0
        %677 = vmatprep.subr.mxu0 0.0
        %678 = vmatpush1.msra.mxu0 0.0
        %679 = vmatprep.subr.mxu0 0.0
        %680 = vmatpush1.msra.mxu0 0.0
        %681 = vmatprep.subr.mxu0 0.0
        %682 = vmatpush1.msra.mxu0 0.0
        %683 = vmatprep.subr.mxu0 0.0
        %684 = vmatpush1.msra.mxu0 0.0
        %685 = vmatprep.subr.mxu0 0.0
        %686 = vmatpush1.msra.mxu0 0.0
        %687 = vmatprep.subr.mxu0 0.0
        %688 = vmatpush1.msra.mxu0 0.0
        %689 = vmatprep.subr.mxu0 0.0
        %690 = vmatpush1.msra.mxu0 0.0
        %691 = vmatprep.subr.mxu0 0.0
        %692 = vmatpush1.msra.mxu0 0.0
        %693 = vmatprep.subr.mxu0 0.0
        %694 = vmatpush1.msra.mxu0 0.0
        %695 = vmatprep.subr.mxu0 0.0
        %696 = vmatpush1.msra.mxu0 0.0
        %697 = vmatprep.subr.mxu0 0.0
        %698 = vmatpush1.msra.mxu0 0.0
        %699 = vmatprep.subr.mxu0 0.0
        %700 = vmatpush1.msra.mxu0 0.0
        %701 = vmatprep.subr.mxu0 0.0
        %702 = vmatpush1.msra.mxu0 0.0
        %703 = vmatprep.subr.mxu0 0.0
        %704 = vmatpush1.msra.mxu0 0.0
        %705 = vmatprep.subr.mxu0 0.0
        %706 = vmatpush1.msra.mxu0 0.0
        %707 = vmatprep.subr.mxu0 0.0
        %708 = vmatpush1.msra.mxu0 0.0
        %709 = vmatprep.subr.mxu0 0.0
        %710 = vmatpush1.msra.mxu0 0.0
        %711 = vmatprep.mubr.f32.mxu0 0.0
        %v712 = vand.u32 %v296, 4294901760
        %713 = vmatmul.mubr.f32.gmra.mrb[0].mxu0 %v712
        %v714 = vpop.f32.mrb[0].mxu0
        %v715 = vadd.f32 %v630, %v714
        %v716 = vpop.f32.mrb[0].mxu0
        %717 = vmatprep.mubr.f32.mxu0 0.0
        %v718 = vand.u32 %v299, 4294901760
        %719 = vmatmul.mubr.f32.gmra.mrb[0].mxu0 %v718
        %v720 = vpop.f32.mrb[0].mxu0
        %v721 = vadd.f32 %v638, %v720
        %v722 = vpop.f32.mrb[0].mxu0
        %723 = vdwg.mxu0
        %724 = vmatprep.subr.mxu0 0.0
        %v725 = vand.u32 %v286, 4294901760
        %726 = vmatpush1.msra.mxu0 %v725
        %727 = vmatprep.subr.mxu0 0.0
        %v728 = vand.u32 %v287, 4294901760
        %729 = vmatpush1.msra.mxu0 %v728
        %730 = vmatprep.subr.mxu0 0.0
        %731 = vmatpush1.msra.mxu0 0.0
        %732 = vmatprep.subr.mxu0 0.0
        %733 = vmatpush1.msra.mxu0 0.0
        %734 = vmatprep.subr.mxu0 0.0
        %735 = vmatpush1.msra.mxu0 0.0
        %736 = vmatprep.subr.mxu0 0.0
        %737 = vmatpush1.msra.mxu0 0.0
        %738 = vmatprep.subr.mxu0 0.0
        %739 = vmatpush1.msra.mxu0 0.0
        %740 = vmatprep.subr.mxu0 0.0
        %741 = vmatpush1.msra.mxu0 0.0
        %742 = vmatprep.subr.mxu0 0.0
        %743 = vmatpush1.msra.mxu0 0.0
        %744 = vmatprep.subr.mxu0 0.0
        %745 = vmatpush1.msra.mxu0 0.0
        %746 = vmatprep.subr.mxu0 0.0
        %747 = vmatpush1.msra.mxu0 0.0
        %748 = vmatprep.subr.mxu0 0.0
        %749 = vmatpush1.msra.mxu0 0.0
        %750 = vmatprep.subr.mxu0 0.0
        %751 = vmatpush1.msra.mxu0 0.0
        %752 = vmatprep.subr.mxu0 0.0
        %753 = vmatpush1.msra.mxu0 0.0
        %754 = vmatprep.subr.mxu0 0.0
        %755 = vmatpush1.msra.mxu0 0.0
        %756 = vmatprep.subr.mxu0 0.0
        %757 = vmatpush1.msra.mxu0 0.0
        %758 = vmatprep.subr.mxu0 0.0
        %759 = vmatpush1.msra.mxu0 0.0
        %760 = vmatprep.subr.mxu0 0.0
        %761 = vmatpush1.msra.mxu0 0.0
        %762 = vmatprep.subr.mxu0 0.0
        %763 = vmatpush1.msra.mxu0 0.0
        %764 = vmatprep.subr.mxu0 0.0
        %765 = vmatpush1.msra.mxu0 0.0
        %766 = vmatprep.subr.mxu0 0.0
        %767 = vmatpush1.msra.mxu0 0.0
        %768 = vmatprep.subr.mxu0 0.0
        %769 = vmatpush1.msra.mxu0 0.0
        %770 = vmatprep.subr.mxu0 0.0
        %771 = vmatpush1.msra.mxu0 0.0
        %772 = vmatprep.subr.mxu0 0.0
        %773 = vmatpush1.msra.mxu0 0.0
        %774 = vmatprep.subr.mxu0 0.0
        %775 = vmatpush1.msra.mxu0 0.0
        %776 = vmatprep.subr.mxu0 0.0
        %777 = vmatpush1.msra.mxu0 0.0
        %778 = vmatprep.subr.mxu0 0.0
        %779 = vmatpush1.msra.mxu0 0.0
        %780 = vmatprep.subr.mxu0 0.0
        %781 = vmatpush1.msra.mxu0 0.0
        %782 = vmatprep.subr.mxu0 0.0
        %783 = vmatpush1.msra.mxu0 0.0
        %784 = vmatprep.subr.mxu0 0.0
        %785 = vmatpush1.msra.mxu0 0.0
        %786 = vmatprep.subr.mxu0 0.0
        %787 = vmatpush1.msra.mxu0 0.0
        %788 = vmatprep.subr.mxu0 0.0
        %789 = vmatpush1.msra.mxu0 0.0
        %790 = vmatprep.mubr.f32.mxu0 0.0
        %v791 = vand.u32 %v296, 4294901760
        %792 = vmatmul.mubr.f32.gmra.mrb[0].mxu0 %v791
        %v793 = vpop.f32.mrb[0].mxu0
        %v794 = vadd.f32 %v715, %v793
        %v795 = vpop.f32.mrb[0].mxu0
        %796 = vmatprep.mubr.f32.mxu0 0.0
        %v797 = vand.u32 %v299, 4294901760
        %798 = vmatmul.mubr.f32.gmra.mrb[0].mxu0 %v797
        %v799 = vpop.f32.mrb[0].mxu0
        %v800 = vadd.f32 %v721, %v799
        %v801 = vpop.f32.mrb[0].mxu0
        %802 = vdwg.mxu0
        %v803 = vadd.f32 %v292, %v794
        %v804 = vadd.f32 %v293, %v800
        %805 = vst [vmem:[#allocation2] sm:$0xff] %v803
        %806 = vst [vmem:[#allocation2 + $0x8] sm:$0xff] %v804
        %p807 = scmp.eq.s32.totalorder %s23, 8
        // Predicated region
        $region79: #{mobileone_block_forward.2} parent=65 // pred_check
          %p808 = pneg %p807
        $region80: #{mobileone_block_forward.2} parent=65 // pred_check_branch
          %810 = sbr.rel (%p808) target = $region82
        $region81: #{mobileone_block_forward.2} parent=65 // pred_region
          %v811 = vld [vmem:[#allocation2] sm:$0xff]
          %v812 = vld [vmem:[#allocation2 + $0x8] sm:$0xff]
          %v813 = vld [vmem:[%s2] sm:$0xff]
          %v814 = vld [vmem:[%s2 + $0x8] sm:$0xff]
          %816 = vset.pattern.permute.xlu0 0
          %817 = vperm.xlu0 %816, %v813
          %v818 = vpop.permute.xlu0 %817
          %821 = vset.pattern.permute.xlu0 0
          %822 = vperm.xlu0 %821, %v814
          %v823 = vpop.permute.xlu0 %822
          %v825 = vadd.f32 %v811, %v818
          %v826 = vadd.f32 %v812, %v823
          %827 = vst [vmem:[%s259] sm:$0xff] %v825
          %828 = vst [vmem:[%s259 + $0x8] sm:$0xff] %v826
          %v829 = vld [vmem:[%s271] sm:$0xff]
          %v830 = vld [vmem:[%s271 + $0x8] sm:$0xff]
          %831 = vadd.xlane.f32.xlu0 %v825
          %v832 = vpop.xlane.xlu0 %831
          %833 = vadd.xlane.f32.xlu0 %v826
          %v834 = vpop.xlane.xlu0 %833
          %v835 = vadd.f32 %v829, %v832
          %v836 = vadd.f32 %v830, %v834
          %vm837 = vcmask 7168
          %838 = vst.msk [vmem:[%s271] sm:$0xff] %vm837, %v835
          %839 = vst.msk [vmem:[%s271 + $0x8] sm:$0xff] %vm837, %v836
        $region82: #{mobileone_block_forward.2} parent=65 // pred_fallthru
          _
        %s840 = sand.u32 %s117, 1
        %s841 = sand.u32 %s117, 1
        %s842 = smul.addr %s841, 16
        %s843 = scalar_lea.vmem [#allocation4], %s842
        %p844 = scmp.lt.s32.totalorder %s21, 1
        %s845 = scalar_select %p844, %s21, 1
        %s846 = smul.addr %s845, 2
        %s847 = smul.addr %s846, 8
        %s848 = scalar_lea.vmem %s4, %s847
        // Predicated region
        $region83: #{mobileone_block_forward.2} parent=65 // pred_check
          %p849 = pneg %p127
        $region84: #{mobileone_block_forward.2} parent=65 // pred_check_branch
          %851 = sbr.rel (%p849) target = $region86
        $region85: #{mobileone_block_forward.2} parent=65 // pred_region
          %s852 = smul.addr %s21, 4
          %s853 = sadd.s32 %s22, %s852
          %s854 = smul.addr %s853, 8
          %s855 = scalar_lea.vmem %s3, %s854
          // Predicated region
          $region87: #{mobileone_block_forward.2} parent=85 // pred_check
            _
          $region88: #{mobileone_block_forward.2} parent=85 // pred_check_branch
            %857 = sbr.rel (0) target = $region90
          $region89: #{mobileone_block_forward.2} parent=85 // pred_region
            // Predicated region
            $region91: #{mobileone_block_forward.2} parent=89 // pred_check
              _
            $region92: #{mobileone_block_forward.2} parent=89 // pred_check_branch
              %859 = sbr.rel (0) target = $region94
            $region93: #{mobileone_block_forward.2} parent=89 // pred_region
              // Predicated region
              $region106: #{mobileone_block_forward.2} parent=93 // pred_check
                _
              $region107: #{mobileone_block_forward.2} parent=93 // pred_check_branch
                %876 = sbr.rel (0) target = $region109
              $region108: #{mobileone_block_forward.2} parent=93 // pred_region
                loop: start=0, step=1, limit=1
                $region110: #{mobileone_block_forward.2} parent=108 // loop_pre_header
                  _
                $region111: #{mobileone_block_forward.2} parent=108 // loop_header
                  %s878 = sphi 0, %s882
                  %p879 = scmp.ge.s32.totalorder %s878, 1
                  %s883 = sphi %s843, %s843
                  %s884 = sphi %s855, %s855
                $region112: #{mobileone_block_forward.2} parent=108 // loop_header_branch
                  %881 = sbr.rel (%p879) target = $region116
                $region113: #{mobileone_block_forward.2} parent=108 // loop_body
                  %v885 = vld [vmem:[%s883] sm:$0xff]
                  %886 = vst [vmem:[%s884] sm:$0xff] %v885
                  %v887 = vld [vmem:[%s883 + $0x8] sm:$0xff]
                  %888 = vst [vmem:[%s884 + $0x10] sm:$0xff] %v887
                $region114: #{mobileone_block_forward.2} parent=108 // loop_footer
                  %s882 = sadd.s32 1, %s878
                $region115: #{mobileone_block_forward.2} parent=108 // loop_footer_branch
                  %877 = sbr.rel target = $region111
                $region116: #{mobileone_block_forward.2} parent=108 // loop_exit
                  _
              $region109: #{mobileone_block_forward.2} parent=93 // pred_fallthru
                _
              // Predicated region
              $region117: #{mobileone_block_forward.2} parent=93 // pred_check
                _
              $region118: #{mobileone_block_forward.2} parent=93 // pred_check_branch
                %890 = sbr.rel target = $region120
              $region119: #{mobileone_block_forward.2} parent=93 // pred_region
                _
              $region120: #{mobileone_block_forward.2} parent=93 // pred_fallthru
                _
            $region94: #{mobileone_block_forward.2} parent=89 // pred_fallthru
              _
            // Predicated region
            $region95: #{mobileone_block_forward.2} parent=89 // pred_check
              _
            $region96: #{mobileone_block_forward.2} parent=89 // pred_check_branch
              %861 = sbr.rel target = $region98
            $region97: #{mobileone_block_forward.2} parent=89 // pred_region
              loop: start=0, step=1, limit=1
              $region99: #{mobileone_block_forward.2} parent=97 // loop_pre_header
                _
              $region100: #{mobileone_block_forward.2} parent=97 // loop_header
                %s864 = sphi 0, %s868
                %p865 = scmp.ge.s32.totalorder %s864, 1
                %s869 = sphi %s843, %s843
                %s870 = sphi %s855, %s855
              $region101: #{mobileone_block_forward.2} parent=97 // loop_header_branch
                %867 = sbr.rel (%p865) target = $region105
              $region102: #{mobileone_block_forward.2} parent=97 // loop_body
                %v871 = vld [vmem:[%s869] sm:$0xff]
                %872 = vst [vmem:[%s870] sm:$0xff] %v871
                %v873 = vld [vmem:[%s869 + $0x8] sm:$0xff]
                %874 = vst [vmem:[%s870 + $0x10] sm:$0xff] %v873
              $region103: #{mobileone_block_forward.2} parent=97 // loop_footer
                %s868 = sadd.s32 1, %s864
              $region104: #{mobileone_block_forward.2} parent=97 // loop_footer_branch
                %863 = sbr.rel target = $region100
              $region105: #{mobileone_block_forward.2} parent=97 // loop_exit
                _
            $region98: #{mobileone_block_forward.2} parent=89 // pred_fallthru
              _
          $region90: #{mobileone_block_forward.2} parent=85 // pred_fallthru
            _
          %891 = vnop
        $region86: #{mobileone_block_forward.2} parent=65 // pred_fallthru
          _
        // Predicated region
        $region121: #{mobileone_block_forward.2} parent=65 // pred_check
          %p892 = pneg %p153
        $region122: #{mobileone_block_forward.2} parent=65 // pred_check_branch
          %894 = sbr.rel (%p892) target = $region124
        $region123: #{mobileone_block_forward.2} parent=65 // pred_region
          _
        $region124: #{mobileone_block_forward.2} parent=65 // pred_fallthru
          _
      $region66: #{mobileone_block_forward.2} parent=5 // pred_fallthru
        _
      %p895 = scmp.le.s32.totalorder 2, %s11
      // Predicated region
      $region125: #{mobileone_block_forward.2} parent=5 // pred_check
        %p896 = pneg %p895
      $region126: #{mobileone_block_forward.2} parent=5 // pred_check_branch
        %898 = sbr.rel (%p896) target = $region128
      $region127: #{mobileone_block_forward.2} parent=5 // pred_region
        %s899 = ssub.s32 %s11, 2
        // Predicated region
        $region129: #{mobileone_block_forward.2} parent=127 // pred_check
          %p900 = pneg %p133
        $region130: #{mobileone_block_forward.2} parent=127 // pred_check_branch
          %902 = sbr.rel (%p900) target = $region132
        $region131: #{mobileone_block_forward.2} parent=127 // pred_region
          %s903 = sand.u32 %s118, 1
          %s904 = sand.u32 %s118, 1
          %s905 = smul.addr %s904, 16
          %s906 = scalar_lea.vmem [#allocation4], %s905
        $region132: #{mobileone_block_forward.2} parent=127 // pred_fallthru
          _
        // Predicated region
        $region133: #{mobileone_block_forward.2} parent=127 // pred_check
          %p907 = pneg %p159
        $region134: #{mobileone_block_forward.2} parent=127 // pred_check_branch
          %909 = sbr.rel (%p907) target = $region136
        $region135: #{mobileone_block_forward.2} parent=127 // pred_region
          %p910 = scmp.lt.s32.totalorder %s24, 1
          %s911 = scalar_select %p910, %s24, 1
          %s912 = smul.addr %s911, 2
          %s913 = smul.addr %s912, 8
          %s914 = scalar_lea.vmem %s4, %s913
        $region136: #{mobileone_block_forward.2} parent=127 // pred_fallthru
          _
      $region128: #{mobileone_block_forward.2} parent=5 // pred_fallthru
        _
    $region6: #{mobileone_block_forward.2} parent=1 // loop_footer
      %s15 = sadd.s32 1, %s11
    $region7: #{mobileone_block_forward.2} parent=1 // loop_footer_branch
      %10 = sbr.rel target = $region3
    $region8: #{mobileone_block_forward.2} parent=1 // loop_exit
      _

</llo_original>
